<compile_context>
chip_gen: v5e
topology: v5e:2x2
jax: 0.10.0
libtpu: 0.0.40
codegen_flags: <defaults>
</compile_context>

<pallas_src>
import functools

import jax
import jax.numpy as jnp
from jax.experimental import pallas as pl
from jax.experimental.pallas import tpu as pltpu


def _round_up(x, m):
    return ((x + m - 1) // m) * m


# ---------------------------------------------------------------------------
# Fused DirGNN forward.
# Grid = (num_layers, num_row_tiles), both serial.  Per layer l:
#   prep   (t==0)    : h = act (layer 0: DMA x from HBM);  g1 = h@(aW1), g2 = h@((1-a)W2)
#   tile   (every t) : act[rows t] = A_norm[t,:] @ g1          (forward partial)
#                      rev        += A_norm[t,:]^T @ g2[rows t] (reverse accumulation)
#   final  (t==T-1)  : y = act + rev + b1' + b2'
#                      last layer -> output;  else act = l2norm(relu(y))
# ---------------------------------------------------------------------------
def _make_fused_dirgnn_kernel(tm, normalize):
    def kernel(adj_ref, x_hbm_ref, w1_ref, b1_ref, w2_ref, b2_ref, o_ref,
               act_ref, g1_ref, g2_ref, rev_ref, dma_sem):
        l = pl.program_id(0)
        t = pl.program_id(1)
        last_layer = pl.num_programs(0) - 1
        last_tile = pl.num_programs(1) - 1
        row0 = pl.multiple_of(t * tm, 128)

        # -------- per-layer prep (once, at t == 0) --------
        @pl.when(t == 0)
        def _prep():
            @pl.when(l == 0)
            def _seed_input():
                # One-shot DMA: x never occupies VMEM for the rest of the kernel.
                cp = pltpu.make_async_copy(x_hbm_ref, act_ref, dma_sem.at[0])
                cp.start()
                cp.wait()

            h = act_ref[...].astype(jnp.bfloat16)                       # (Np, P)
            g1_ref[...] = jnp.dot(h, w1_ref[0],
                                  preferred_element_type=jnp.float32).astype(jnp.bfloat16)
            g2_ref[...] = jnp.dot(h, w2_ref[0],
                                  preferred_element_type=jnp.float32).astype(jnp.bfloat16)
            rev_ref[...] = jnp.zeros_like(rev_ref)

        # -------- aggregation: one bf16 row slab serves BOTH directions --------
        a = adj_ref[...]                                                # (TM, Np) bf16, pre-normalized
        # forward: rows [t] of A_norm @ (h W1)  (h for this layer already folded into g1)
        act_ref[pl.ds(row0, tm), :] = jnp.dot(
            a, g1_ref[...], preferred_element_type=jnp.float32)
        # reverse: A_norm^T @ (h W2) accumulated tile-by-tile; contract the slab's row
        # axis so A^T is never materialized and no column slab is streamed.
        rev_ref[...] += jax.lax.dot_general(
            a, g2_ref[pl.ds(row0, tm), :],
            dimension_numbers=(((0,), (0,)), ((), ())),
            preferred_element_type=jnp.float32)

        # -------- per-layer finalize (once, at t == T-1) --------
        @pl.when(t == last_tile)
        def _finalize():
            y = act_ref[...] + rev_ref[...] + b1_ref[0] + b2_ref[0]     # (Np, P) f32

            @pl.when(l == last_layer)
            def _emit():
                o_ref[...] = y.astype(o_ref.dtype)                      # raw last-layer output

            @pl.when(l < last_layer)
            def _advance():
                # relu -> dropout (eval: identity) -> optional row L2-normalize
                nxt = jnp.maximum(y, 0.0)
                if normalize:
                    ss = jnp.sum(nxt * nxt, axis=1, keepdims=True)
                    nxt = nxt * jax.lax.rsqrt(jnp.maximum(ss, 1e-24))   # x / max(||x||, 1e-12)
                act_ref[...] = nxt

    return kernel


def dirgnn_fused(adj_norm_bf16, x_pad, w1s, b1s, w2s, b2s,
                 *, tm, normalize, vmem_limit_bytes):
    np_, p = x_pad.shape
    num_layers = w1s.shape[0]
    nt = np_ // tm
    kernel = _make_fused_dirgnn_kernel(tm, bool(normalize))
    return pl.pallas_call(
        kernel,
        out_shape=jax.ShapeDtypeStruct((np_, p), jnp.float32),
        grid_spec=pltpu.PrefetchScalarGridSpec(
            num_scalar_prefetch=0,
            grid=(num_layers, nt),
            in_specs=[
                pl.BlockSpec((tm, np_), lambda l, t: (t, 0)),     # normalized adjacency row slab (bf16)
                pl.BlockSpec(memory_space=pl.ANY),                # x stays in HBM; DMA'd once
                pl.BlockSpec((1, p, p), lambda l, t: (l, 0, 0)),  # alpha * W1      (bf16)
                pl.BlockSpec((1, 1, p), lambda l, t: (l, 0, 0)),  # alpha * b1      (f32)
                pl.BlockSpec((1, p, p), lambda l, t: (l, 0, 0)),  # (1-alpha) * W2  (bf16)
                pl.BlockSpec((1, 1, p), lambda l, t: (l, 0, 0)),  # (1-alpha) * b2  (f32)
            ],
            out_specs=pl.BlockSpec((np_, p), lambda l, t: (0, 0)),  # resident -> one HBM writeback
            scratch_shapes=[
                pltpu.VMEM((np_, p), jnp.float32),    # act: h, then forward partials, then next h
                pltpu.VMEM((np_, p), jnp.bfloat16),   # g1 = h @ (alpha*W1)
                pltpu.VMEM((np_, p), jnp.bfloat16),   # g2 = h @ ((1-alpha)*W2)
                pltpu.VMEM((np_, p), jnp.float32),    # reverse-direction accumulator
                pltpu.SemaphoreType.DMA((1,)),        # one-shot x DMA
            ],
        ),
        compiler_params=pltpu.CompilerParams(
            dimension_semantics=("arbitrary", "arbitrary"),
            vmem_limit_bytes=vmem_limit_bytes,
        ),
    )(adj_norm_bf16, x_pad, w1s, b1s, w2s, b2s)


# ---------------------------------------------------------------------------
# Parameters (torch.nn.Linear-style init, W stored as [in, out], b as [1, out]).
# ---------------------------------------------------------------------------
def init_linear(key, in_dim, out_dim):
    kw, kb = jax.random.split(key)
    bound = 1.0 / jnp.sqrt(jnp.asarray(in_dim, jnp.float32))
    w = jax.random.uniform(kw, (in_dim, out_dim), jnp.float32, -bound, bound)
    b = jax.random.uniform(kb, (1, out_dim), jnp.float32, -bound, bound)
    return w, b


def init_dirgnn_params(key, input_dim, hidden_dim, embed_dim, num_layers):
    if num_layers == 1:
        dims = [(input_dim, embed_dim)]
    else:
        dims = [(input_dim, hidden_dim)]
        dims += [(hidden_dim, hidden_dim)] * (num_layers - 2)
        dims += [(hidden_dim, embed_dim)]
    params = []
    for (d_in, d_out) in dims:
        key, k1, k2 = jax.random.split(key, 3)
        w1, b1 = init_linear(k1, d_in, d_out)   # lin_src_to_dst
        w2, b2 = init_linear(k2, d_in, d_out)   # lin_dst_to_src
        params.append((w1, b1, w2, b2))
    return params


# ---------------------------------------------------------------------------
# Full forward (jk=None): one-time XLA preprocessing + the fused kernel.
# ---------------------------------------------------------------------------
@functools.partial(jax.jit, static_argnames=("alpha", "normalize", "tm"))
def dirgnn_forward(x, adj, params, *, alpha, normalize, tm=None):
    n, input_dim = x.shape
    embed_dim = params[-1][0].shape[1]
    feat_dims = [input_dim] + [w1.shape[1] for (w1, _, _, _) in params]
    p = _round_up(max(feat_dims), 128)      # lane-dense padded feature width

    # Row-tile size: single tile for small graphs (adjacency stays VMEM-resident
    # across layers); tm=256 otherwise (fills the 256-wide MXU on v6e/v7x, still
    # fits v7x's 64 MiB with the single-slab design; on v5e it just reduces
    # per-step overhead).
    if tm is None:
        np128 = _round_up(n, 128)
        tm = np128 if np128 <= 512 else 256
    assert tm % 128 == 0, "row-tile size must be a multiple of 128"
    np_ = _round_up(n, tm)

    # One-time O(N^2) preprocessing in plain XLA (mirrors the torch module's cached
    # adj_norm):  D_out^-1/2 A D_in^-1/2 folded into a single bf16 adjacency, so the
    # kernel never does any per-slab scaling on the VPU.  Zero padding is exact
    # (padded rows/cols have zero degree -> zero entries).
    a = jnp.zeros((np_, np_), jnp.float32).at[:n, :n].set(adj.astype(jnp.float32))
    out_deg = jnp.sum(a, axis=1, keepdims=True)
    in_deg = jnp.sum(a, axis=0, keepdims=True)
    s_out = jnp.where(out_deg > 0.0, jax.lax.rsqrt(out_deg), 0.0)
    s_in = jnp.where(in_deg > 0.0, jax.lax.rsqrt(in_deg), 0.0)
    adj_norm = (s_out * a * s_in).astype(jnp.bfloat16)

    x_pad = jnp.zeros((np_, p), jnp.float32).at[:n, :input_dim].set(x)

    # Fold alpha / (1-alpha) into weights & biases; zero-pad to [P,P] / [1,P].
    al = float(alpha)

    def pad_w(w, scale):
        return jnp.zeros((p, p), jnp.float32).at[:w.shape[0], :w.shape[1]].set(scale * w)

    def pad_b(b, scale):
        return jnp.zeros((1, p), jnp.float32).at[:, :b.shape[1]].set(scale * b)

    w1s = jnp.stack([pad_w(w1, al) for (w1, _, _, _) in params]).astype(jnp.bfloat16)
    b1s = jnp.stack([pad_b(b1, al) for (_, b1, _, _) in params])
    w2s = jnp.stack([pad_w(w2, 1.0 - al) for (_, _, w2, _) in params]).astype(jnp.bfloat16)
    b2s = jnp.stack([pad_b(b2, 1.0 - al) for (_, _, _, b2) in params])

    # Explicit VMEM budget (bytes): scratches + resident output + double-buffered
    # adjacency slab + per-layer weight blocks; 2x headroom, floored at 32 MiB
    # (v5e's default scoped limit is only 16 MiB), capped at 64 MiB (v7x physical).
    scratch_bytes = np_ * p * (4 + 2 + 2 + 4)
    out_bytes = 2 * np_ * p * 4
    adj_bytes = 2 * tm * np_ * 2
    w_bytes = 2 * (2 * p * p * 2 + 2 * p * 4)
    need = scratch_bytes + out_bytes + adj_bytes + w_bytes
    vmem_limit = int(min(max(2 * need + (4 << 20), 32 << 20), 64 << 20))

    out_pad = dirgnn_fused(adj_norm, x_pad, w1s, b1s, w2s, b2s,
                           tm=tm, normalize=normalize, vmem_limit_bytes=vmem_limit)
    # TODO(synk): JumpingKnowledge ('cat'/'max') + final Linear not implemented (args.jk=None here).
    return out_pad[:n, :embed_dim]


# ---------------------------------------------------------------------------
# Pure-JAX f32 reference (mirrors the torch module) for a correctness check.
# ---------------------------------------------------------------------------
def dirgnn_reference(x, adj, params, *, alpha, normalize):
    a = adj.astype(jnp.float32)
    in_deg = a.sum(axis=0)
    out_deg = a.sum(axis=1)
    s_in = jnp.where(in_deg > 0, jax.lax.rsqrt(in_deg), 0.0)
    s_out = jnp.where(out_deg > 0, jax.lax.rsqrt(out_deg), 0.0)
    adj_norm = s_out[:, None] * a * s_in[None, :]
    adj_t_norm = adj_norm.T
    h = x
    num_layers = len(params)
    for i, (w1, b1, w2, b2) in enumerate(params):
        y = alpha * ((adj_norm @ h) @ w1 + b1) + (1.0 - alpha) * ((adj_t_norm @ h) @ w2 + b2)
        if i != num_layers - 1:
            y = jnp.maximum(y, 0.0)
            if normalize:
                nrm = jnp.sqrt(jnp.sum(y * y, axis=1, keepdims=True))
                y = y / jnp.maximum(nrm, 1e-12)
        h = y
    return h


if __name__ == "__main__":
    # args: input_dim=16, hidden=32, embed_dim=8, alpha=0.5, nlayer=2,
    #       jk=None, dropout (eval: identity), normalize=True
    N, INPUT_DIM, HIDDEN, EMBED, NLAYER = 200, 16, 32, 8, 2
    ALPHA, NORMALIZE = 0.5, True
    NUM_EDGES = 800

    key = jax.random.PRNGKey(0)
    kx, kr, kc, kp = jax.random.split(key, 4)

    x = jax.random.normal(kx, (N, INPUT_DIM), jnp.float32)
    row = jax.random.randint(kr, (NUM_EDGES,), 0, N)
    col = jax.random.randint(kc, (NUM_EDGES,), 0, N)
    # dense equivalent of SparseTensor(row, col); the transpose is never materialized.
    adj = jnp.zeros((N, N), jnp.float32).at[row, col].set(1.0)

    params = init_dirgnn_params(kp, INPUT_DIM, HIDDEN, EMBED, NLAYER)

    out = dirgnn_forward(x, adj, params, alpha=ALPHA, normalize=NORMALIZE)
    out = jax.block_until_ready(out)

    assert out.shape == (N, EMBED) and out.dtype == jnp.float32
    assert bool(jnp.all(jnp.isfinite(out)))
    ref = dirgnn_reference(x, adj, params, alpha=ALPHA, normalize=NORMALIZE)
    assert bool(jnp.allclose(out, ref, rtol=2e-2, atol=2e-2)), float(jnp.max(jnp.abs(out - ref)))
    print("KERNEL_OK")
</pallas_src>

<mosaic_0001>
module attributes {stable_mosaic.version = 11 : i64} {
  func.func @kernel(%arg0: i32, %arg1: i32, %arg2: memref<256x256xbf16, #tpu.memory_space<vmem>>, %arg3: memref<256x128xf32, #tpu.memory_space<any>>, %arg4: memref<1x128x128xbf16, #tpu.memory_space<vmem>>, %arg5: memref<1x1x128xf32, #tpu.memory_space<vmem>>, %arg6: memref<1x128x128xbf16, #tpu.memory_space<vmem>>, %arg7: memref<1x1x128xf32, #tpu.memory_space<vmem>>, %arg8: memref<256x128xf32, #tpu.memory_space<vmem>>, %arg9: memref<256x128xf32, #tpu.memory_space<vmem>>, %arg10: memref<256x128xbf16, #tpu.memory_space<vmem>>, %arg11: memref<256x128xbf16, #tpu.memory_space<vmem>>, %arg12: memref<256x128xf32, #tpu.memory_space<vmem>>, %arg13: memref<1x!tpu.dma_semaphore, #tpu.memory_space<semaphore_mem>>) attributes {dimension_semantics = [#tpu.dimension_semantics<arbitrary>, #tpu.dimension_semantics<arbitrary>], iteration_bounds = array<i64: 2, 1>, scalar_prefetch = 0 : i64, scratch_operands = 5 : i64, tpu.core_type = #tpu.core_type<tc>, window_params = [{transform_indices = @transform_0, window_bounds = array<i64: 256, 256>}, {}, {transform_indices = @transform_2, window_bounds = array<i64: 1, 128, 128>}, {transform_indices = @transform_3, window_bounds = array<i64: 1, 1, 128>}, {transform_indices = @transform_4, window_bounds = array<i64: 1, 128, 128>}, {transform_indices = @transform_5, window_bounds = array<i64: 1, 1, 128>}, {pipeline_mode = #tpu.pipeline_mode<synchronous>, transform_indices = @transform_6, window_bounds = array<i64: 256, 128>}]} {
    %c256_i32 = arith.constant 256 : i32
    %0 = arith.muli %arg1, %c256_i32 : i32
    %1 = tpu.assume_multiple %0, 128 : i32
    %c0_i32 = arith.constant 0 : i32
    %2 = arith.cmpi eq, %arg1, %c0_i32 : i32
    %3 = arith.extui %2 : i1 to i32
    %c0_i32_0 = arith.constant 0 : i32
    %4 = arith.cmpi ne, %3, %c0_i32_0 : i32
    scf.if %4 {
      %c0_i32_13 = arith.constant 0 : i32
      %19 = arith.cmpi eq, %arg0, %c0_i32_13 : i32
      %20 = arith.extui %19 : i1 to i32
      %c0_i32_14 = arith.constant 0 : i32
      %21 = arith.cmpi ne, %20, %c0_i32_14 : i32
      scf.if %21 {
        %c0_i32_32 = arith.constant 0 : i32
        %36 = tpu.memref_slice %arg13[%c0_i32_32] : memref<1x!tpu.dma_semaphore, #tpu.memory_space<semaphore_mem>> -> memref<1x!tpu.dma_semaphore, #tpu.memory_space<semaphore_mem>>
        %37 = tpu.memref_squeeze %36 : memref<1x!tpu.dma_semaphore, #tpu.memory_space<semaphore_mem>> -> memref<!tpu.dma_semaphore, #tpu.memory_space<semaphore_mem>>
        tpu.enqueue_dma source(%arg3 : memref<256x128xf32, #tpu.memory_space<any>>) target(%arg9 : memref<256x128xf32, #tpu.memory_space<vmem>>) target_semaphore(%37 : memref<!tpu.dma_semaphore, #tpu.memory_space<semaphore_mem>>)
        %c0_i32_33 = arith.constant 0 : i32
        %38 = tpu.memref_slice %arg13[%c0_i32_33] : memref<1x!tpu.dma_semaphore, #tpu.memory_space<semaphore_mem>> -> memref<1x!tpu.dma_semaphore, #tpu.memory_space<semaphore_mem>>
        %39 = tpu.memref_squeeze %38 : memref<1x!tpu.dma_semaphore, #tpu.memory_space<semaphore_mem>> -> memref<!tpu.dma_semaphore, #tpu.memory_space<semaphore_mem>>
        tpu.wait_dma2 semaphore(%39 : memref<!tpu.dma_semaphore, #tpu.memory_space<semaphore_mem>>) src(%arg3 : memref<256x128xf32, #tpu.memory_space<any>>) dst(%arg9 : memref<256x128xf32, #tpu.memory_space<vmem>>)
      } else {
      }
      %c0_15 = arith.constant 0 : index
      %c0_16 = arith.constant 0 : index
      %22 = vector.load %arg9[%c0_15, %c0_16] : memref<256x128xf32, #tpu.memory_space<vmem>>, vector<256x128xf32>
      %23 = arith.truncf %22 : vector<256x128xf32> to vector<256x128xbf16>
      %c0_17 = arith.constant 0 : index
      %c0_18 = arith.constant 0 : index
      %c0_19 = arith.constant 0 : index
      %24 = vector.load %arg4[%c0_17, %c0_18, %c0_19] : memref<1x128x128xbf16, #tpu.memory_space<vmem>>, vector<1x128x128xbf16>
      %25 = vector.shape_cast %24 : vector<1x128x128xbf16> to vector<128x128xbf16>
      %cst_20 = arith.constant dense<0.000000e+00> : vector<256x128xf32>
      %26 = tpu.matmul %23, %25, %cst_20 {dimension_numbers = #tpu.dot_dimension_numbers<[1], [0], [0], [1], [0, 0, 1, 1], [], []>} : vector<256x128xbf16>, vector<128x128xbf16>, vector<256x128xf32> -> vector<256x128xf32>
      %27 = arith.truncf %26 : vector<256x128xf32> to vector<256x128xbf16>
      %c0_21 = arith.constant 0 : index
      %c0_22 = arith.constant 0 : index
      %28 = vector.load %arg10[%c0_21, %c0_22] : memref<256x128xbf16, #tpu.memory_space<vmem>>, vector<256x128xbf16>
      tpu.vector_store %arg10[%c0_21, %c0_22], %27 {strides = array<i32>} : memref<256x128xbf16, #tpu.memory_space<vmem>>, vector<256x128xbf16>,
      %c0_23 = arith.constant 0 : index
      %c0_24 = arith.constant 0 : index
      %c0_25 = arith.constant 0 : index
      %29 = vector.load %arg6[%c0_23, %c0_24, %c0_25] : memref<1x128x128xbf16, #tpu.memory_space<vmem>>, vector<1x128x128xbf16>
      %30 = vector.shape_cast %29 : vector<1x128x128xbf16> to vector<128x128xbf16>
      %cst_26 = arith.constant dense<0.000000e+00> : vector<256x128xf32>
      %31 = tpu.matmul %23, %30, %cst_26 {dimension_numbers = #tpu.dot_dimension_numbers<[1], [0], [0], [1], [0, 0, 1, 1], [], []>} : vector<256x128xbf16>, vector<128x128xbf16>, vector<256x128xf32> -> vector<256x128xf32>
      %32 = arith.truncf %31 : vector<256x128xf32> to vector<256x128xbf16>
      %c0_27 = arith.constant 0 : index
      %c0_28 = arith.constant 0 : index
      %33 = vector.load %arg11[%c0_27, %c0_28] : memref<256x128xbf16, #tpu.memory_space<vmem>>, vector<256x128xbf16>
      tpu.vector_store %arg11[%c0_27, %c0_28], %32 {strides = array<i32>} : memref<256x128xbf16, #tpu.memory_space<vmem>>, vector<256x128xbf16>,
      %cst_29 = arith.constant 0.000000e+00 : f32
      %34 = vector.broadcast %cst_29 : f32 to vector<256x128xf32>
      %c0_30 = arith.constant 0 : index
      %c0_31 = arith.constant 0 : index
      %35 = vector.load %arg12[%c0_30, %c0_31] : memref<256x128xf32, #tpu.memory_space<vmem>>, vector<256x128xf32>
      tpu.vector_store %arg12[%c0_30, %c0_31], %34 {strides = array<i32>} : memref<256x128xf32, #tpu.memory_space<vmem>>, vector<256x128xf32>,
    } else {
    }
    %c0 = arith.constant 0 : index
    %c0_1 = arith.constant 0 : index
    %5 = vector.load %arg2[%c0, %c0_1] : memref<256x256xbf16, #tpu.memory_space<vmem>>, vector<256x256xbf16>
    %c0_2 = arith.constant 0 : index
    %c0_3 = arith.constant 0 : index
    %6 = vector.load %arg10[%c0_2, %c0_3] : memref<256x128xbf16, #tpu.memory_space<vmem>>, vector<256x128xbf16>
    %cst = arith.constant dense<0.000000e+00> : vector<256x128xf32>
    %7 = tpu.matmul %5, %6, %cst {dimension_numbers = #tpu.dot_dimension_numbers<[1], [0], [0], [1], [0, 0, 1, 1], [], []>} : vector<256x256xbf16>, vector<256x128xbf16>, vector<256x128xf32> -> vector<256x128xf32>
    %8 = arith.index_cast %1 : i32 to index
    %c0_4 = arith.constant 0 : index
    %9 = vector.load %arg9[%8, %c0_4] : memref<256x128xf32, #tpu.memory_space<vmem>>, vector<256x128xf32>
    tpu.vector_store %arg9[%8, %c0_4], %7 {strides = array<i32>} : memref<256x128xf32, #tpu.memory_space<vmem>>, vector<256x128xf32>,
    %c0_5 = arith.constant 0 : index
    %c0_6 = arith.constant 0 : index
    %10 = vector.load %arg12[%c0_5, %c0_6] : memref<256x128xf32, #tpu.memory_space<vmem>>, vector<256x128xf32>
    %11 = arith.index_cast %1 : i32 to index
    %c0_7 = arith.constant 0 : index
    %12 = vector.load %arg11[%11, %c0_7] : memref<256x128xbf16, #tpu.memory_space<vmem>>, vector<256x128xbf16>
    %cst_8 = arith.constant dense<0.000000e+00> : vector<256x128xf32>
    %13 = tpu.matmul %5, %12, %cst_8 {dimension_numbers = #tpu.dot_dimension_numbers<[0], [0], [1], [1], [0, 1, 1, 1], [], []>} : vector<256x256xbf16>, vector<256x128xbf16>, vector<256x128xf32> -> vector<256x128xf32>
    %14 = arith.addf %10, %13 : vector<256x128xf32>
    %c0_9 = arith.constant 0 : index
    %c0_10 = arith.constant 0 : index
    %15 = vector.load %arg12[%c0_9, %c0_10] : memref<256x128xf32, #tpu.memory_space<vmem>>, vector<256x128xf32>
    tpu.vector_store %arg12[%c0_9, %c0_10], %14 {strides = array<i32>} : memref<256x128xf32, #tpu.memory_space<vmem>>, vector<256x128xf32>,
    %c0_i32_11 = arith.constant 0 : i32
    %16 = arith.cmpi eq, %arg1, %c0_i32_11 : i32
    %17 = arith.extui %16 : i1 to i32
    %c0_i32_12 = arith.constant 0 : i32
    %18 = arith.cmpi ne, %17, %c0_i32_12 : i32
    scf.if %18 {
      %c0_13 = arith.constant 0 : index
      %c0_14 = arith.constant 0 : index
      %19 = vector.load %arg9[%c0_13, %c0_14] : memref<256x128xf32, #tpu.memory_space<vmem>>, vector<256x128xf32>
      %c0_15 = arith.constant 0 : index
      %c0_16 = arith.constant 0 : index
      %20 = vector.load %arg12[%c0_15, %c0_16] : memref<256x128xf32, #tpu.memory_space<vmem>>, vector<256x128xf32>
      %21 = arith.addf %19, %20 : vector<256x128xf32>
      %c0_17 = arith.constant 0 : index
      %c0_18 = arith.constant 0 : index
      %c0_19 = arith.constant 0 : index
      %22 = vector.load %arg5[%c0_17, %c0_18, %c0_19] : memref<1x1x128xf32, #tpu.memory_space<vmem>>, vector<1x1x128xf32>
      %23 = vector.shape_cast %22 : vector<1x1x128xf32> to vector<1x128xf32>
      %24 = vector.broadcast %23 : vector<1x128xf32> to vector<256x128xf32>
      %25 = arith.addf %21, %24 : vector<256x128xf32>
      %c0_20 = arith.constant 0 : index
      %c0_21 = arith.constant 0 : index
      %c0_22 = arith.constant 0 : index
      %26 = vector.load %arg7[%c0_20, %c0_21, %c0_22] : memref<1x1x128xf32, #tpu.memory_space<vmem>>, vector<1x1x128xf32>
      %27 = vector.shape_cast %26 : vector<1x1x128xf32> to vector<1x128xf32>
      %28 = vector.broadcast %27 : vector<1x128xf32> to vector<256x128xf32>
      %29 = arith.addf %25, %28 : vector<256x128xf32>
      %c1_i32 = arith.constant 1 : i32
      %30 = arith.cmpi eq, %arg0, %c1_i32 : i32
      %31 = arith.extui %30 : i1 to i32
      %c0_i32_23 = arith.constant 0 : i32
      %32 = arith.cmpi ne, %31, %c0_i32_23 : i32
      scf.if %32 {
        %c0_26 = arith.constant 0 : index
        %c0_27 = arith.constant 0 : index
        %36 = vector.load %arg8[%c0_26, %c0_27] : memref<256x128xf32, #tpu.memory_space<vmem>>, vector<256x128xf32>
        tpu.vector_store %arg8[%c0_26, %c0_27], %29 {strides = array<i32>} : memref<256x128xf32, #tpu.memory_space<vmem>>, vector<256x128xf32>,
      } else {
      }
      %c1_i32_24 = arith.constant 1 : i32
      %33 = arith.cmpi slt, %arg0, %c1_i32_24 : i32
      %34 = arith.extui %33 : i1 to i32
      %c0_i32_25 = arith.constant 0 : i32
      %35 = arith.cmpi ne, %34, %c0_i32_25 : i32
      scf.if %35 {
        %cst_26 = arith.constant 0.000000e+00 : f32
        %36 = vector.broadcast %cst_26 : f32 to vector<256x128xf32>
        %37 = arith.maximumf %29, %36 : vector<256x128xf32>
        %38 = arith.mulf %37, %37 : vector<256x128xf32>
        %cst_27 = arith.constant dense<0.000000e+00> : vector<256xf32>
        %39 = vector.multi_reduction <add>, %38, %cst_27 [1] : vector<256x128xf32> to vector<256xf32>
        %40 = vector.shape_cast %39 : vector<256xf32> to vector<256x1xf32>
        %cst_28 = arith.constant 1.000000e-24 : f32
        %41 = vector.broadcast %cst_28 : f32 to vector<256x1xf32>
        %42 = arith.maximumf %40, %41 : vector<256x1xf32>
        %43 = math.rsqrt %42 : vector<256x1xf32>
        %44 = vector.broadcast %43 : vector<256x1xf32> to vector<256x128xf32>
        %45 = arith.mulf %37, %44 : vector<256x128xf32>
        %c0_29 = arith.constant 0 : index
        %c0_30 = arith.constant 0 : index
        %46 = vector.load %arg9[%c0_29, %c0_30] : memref<256x128xf32, #tpu.memory_space<vmem>>, vector<256x128xf32>
        tpu.vector_store %arg9[%c0_29, %c0_30], %45 {strides = array<i32>} : memref<256x128xf32, #tpu.memory_space<vmem>>, vector<256x128xf32>,
      } else {
      }
    } else {
    }
    return
  }
  func.func @transform_0(%arg0: i32, %arg1: i32) -> (i32, i32) {
    %c0_i32 = arith.constant 0 : i32
    %c0_i32_0 = arith.constant 0 : i32
    return %arg1, %c0_i32 : i32, i32
  }
  func.func @transform_2(%arg0: i32, %arg1: i32) -> (i32, i32, i32) {
    %c0_i32 = arith.constant 0 : i32
    %c0_i32_0 = arith.constant 0 : i32
    %c0_i32_1 = arith.constant 0 : i32
    return %arg0, %c0_i32, %c0_i32_0 : i32, i32, i32
  }
  func.func @transform_3(%arg0: i32, %arg1: i32) -> (i32, i32, i32) {
    %c0_i32 = arith.constant 0 : i32
    %c0_i32_0 = arith.constant 0 : i32
    %c0_i32_1 = arith.constant 0 : i32
    return %arg0, %c0_i32, %c0_i32_0 : i32, i32, i32
  }
  func.func @transform_4(%arg0: i32, %arg1: i32) -> (i32, i32, i32) {
    %c0_i32 = arith.constant 0 : i32
    %c0_i32_0 = arith.constant 0 : i32
    %c0_i32_1 = arith.constant 0 : i32
    return %arg0, %c0_i32, %c0_i32_0 : i32, i32, i32
  }
  func.func @transform_5(%arg0: i32, %arg1: i32) -> (i32, i32, i32) {
    %c0_i32 = arith.constant 0 : i32
    %c0_i32_0 = arith.constant 0 : i32
    %c0_i32_1 = arith.constant 0 : i32
    return %arg0, %c0_i32, %c0_i32_0 : i32, i32, i32
  }
  func.func @transform_6(%arg0: i32, %arg1: i32) -> (i32, i32) {
    %c0_i32 = arith.constant 0 : i32
    %c0_i32_0 = arith.constant 0 : i32
    %c0_i32_1 = arith.constant 0 : i32
    return %c0_i32, %c0_i32_0 : i32, i32
  }
}

</mosaic_0001>

<llo_original>
// kernel: dirgnn_forward.1
$region0: #{dirgnn_forward.1}
  #allocation0 [shape = 'u32[]', space=smem, size = 0x4, offset = 0x4, fixed_abs, tag = 'smem constant byte address 0x4 - core index']
  #allocation1 [shape = 'u32[72,128]{1,0:T(1,128)}', space=vmem, size = 0x9000, scoped, tag = 'internal scratch']
  #allocation2 [shape = 'f32[256,128]{1,0:T(8,128)}', space=vmem, size = 0x20000, scoped, tag = 'scratch operand']
  #allocation3 [shape = 'bf16[256,128]{1,0:T(8,128)(2,1)}', space=vmem, size = 0x10000, scoped, tag = 'scratch operand']
  #allocation4 [shape = 'bf16[256,128]{1,0:T(8,128)(2,1)}', space=vmem, size = 0x10000, scoped, tag = 'scratch operand']
  #allocation5 [shape = 'f32[256,128]{1,0:T(8,128)}', space=vmem, size = 0x20000, scoped, tag = 'scratch operand']
  #allocation6 [shape = 's32[1]{0}', space=sflag, size = 0x4, scoped, tag = 'scratch operand']
  #allocation7 [shape = 's32[]', space=sflag, size = 0x4, offset = 0, fixed_abs, tag = 'sflag constant byte address 0x0 - dummy sync flag']
  %s0 = inlined_call_operand.vmem [shape: bf16[256,256], index: 0, kind: input, shape index: {}]
  %s1 = inlined_call_operand.vmem [shape: f32[256,128], index: 1, kind: input, shape index: {}]
  %s2 = inlined_call_operand.vmem [shape: bf16[2,128,128], index: 2, kind: input, shape index: {}]
  %s3 = inlined_call_operand.vmem [shape: f32[2,1,128], index: 3, kind: input, shape index: {}]
  %s4 = inlined_call_operand.vmem [shape: bf16[2,128,128], index: 4, kind: input, shape index: {}]
  %s5 = inlined_call_operand.vmem [shape: f32[2,1,128], index: 5, kind: input, shape index: {}]
  %s6 = inlined_call_operand.vmem [shape: f32[256,128], index: 6, kind: output, shape index: {}]
  %s7 = sld [smem:[#allocation0]]
  $region92: #{dirgnn_forward.1} parent=0
    _
  %s9 = ssub.s32 1, %s7
  %s10 = scalar_select 0, %s9, %s7
  loop: start=0, step=1, limit=4
  $region2: #{dirgnn_forward.1} parent=0 // loop_pre_header
    _
  $region3: #{dirgnn_forward.1} parent=0 // loop_header
    %s12 = sphi 0, %s16
    %p13 = scmp.ge.s32.totalorder %s12, 4
    %s19 = sphi 0, %s31
    %s20 = sphi 0, %s27
    %s21 = sphi 0, %s19
    %s22 = sphi 0, %s20
    %s23 = sphi 0, %s21
    %s24 = sphi 0, %s22
    %s34 = sphi 0, %s36
    %s37 = sphi 0, %s34
    %s38 = sphi 0, %s37
    %s54 = sphi 0, %s38
    %s60 = sphi 0, %s62
    %s63 = sphi 0, %s60
    %s64 = sphi 0, %s63
    %s80 = sphi 0, %s64
    %s86 = sphi 0, %s88
    %s89 = sphi 0, %s86
    %s90 = sphi 0, %s89
    %s106 = sphi 0, %s90
    %s112 = sphi 0, %s114
    %s115 = sphi 0, %s112
    %s116 = sphi 0, %s115
    %s132 = sphi 0, %s116
    %s138 = sphi 0, %s140
    %s141 = sphi 0, %s138
    %s142 = sphi 0, %s141
    %s158 = sphi 0, %s142
    %s162 = sphi 0, %s162
    %s164 = sphi 0, %s162
    %s165 = sphi 0, %s164
    %s179 = sphi 0, %s165
  $region4: #{dirgnn_forward.1} parent=0 // loop_header_branch
    %15 = sbr.rel (%p13) target = $region8
  $region5: #{dirgnn_forward.1} parent=0 // loop_body
    %s17 = ssub.s32 %s12, 1
    %s18 = ssub.s32 %s12, 2
    %s25 = sadd.s32 1, %s20
    %p26 = scmp.ge.s32.totalorder %s25, 1
    %s27 = scalar_select %p26, 0, %s25
    %s28 = sadd.s32 1, %s19
    %s29 = scalar_select %p26, %s28, %s19
    %p30 = scmp.ge.s32.totalorder %s29, 2
    %s31 = scalar_select %p30, 0, %s29
    %s32 = ssub.s32 %s20, %s27
    %p33 = scmp.eq.s32.totalorder %s32, 0
    %s35 = sadd.s32 %s34, 1
    %s36 = scalar_select %p33, %s34, %s35
    %p39 = pneg %p33
    %p40 = scmp.eq.s32.totalorder %s12, 1
    %p41 = por %p39, %p40
    %p42 = scmp.ne.s32.totalorder %s34, %s37
    %p43 = scmp.eq.s32.totalorder %s12, 0
    %p44 = por %p42, %p43
    %p45 = scmp.ne.s32.totalorder %s34, %s37
    %p46 = scmp.eq.s32.totalorder %s17, 1
    %p47 = por %p45, %p46
    %p48 = scmp.ne.s32.totalorder %s37, %s38
    %p49 = scmp.eq.s32.totalorder %s17, 0
    %p50 = por %p48, %p49
    %p51 = scmp.ne.s32.totalorder %s37, %s38
    %p52 = scmp.eq.s32.totalorder %s18, 1
    %p53 = por %p51, %p52
    %p55 = scmp.ne.s32.totalorder %s38, %s54
    %p56 = scmp.eq.s32.totalorder %s18, 0
    %p57 = por %p55, %p56
    %s58 = ssub.s32 %s19, %s31
    %p59 = scmp.eq.s32.totalorder %s58, 0
    %s61 = sadd.s32 %s60, 1
    %s62 = scalar_select %p59, %s60, %s61
    %p65 = pneg %p59
    %p66 = scmp.eq.s32.totalorder %s12, 1
    %p67 = por %p65, %p66
    %p68 = scmp.ne.s32.totalorder %s60, %s63
    %p69 = scmp.eq.s32.totalorder %s12, 0
    %p70 = por %p68, %p69
    %p71 = scmp.ne.s32.totalorder %s60, %s63
    %p72 = scmp.eq.s32.totalorder %s17, 1
    %p73 = por %p71, %p72
    %p74 = scmp.ne.s32.totalorder %s63, %s64
    %p75 = scmp.eq.s32.totalorder %s17, 0
    %p76 = por %p74, %p75
    %p77 = scmp.ne.s32.totalorder %s63, %s64
    %p78 = scmp.eq.s32.totalorder %s18, 1
    %p79 = por %p77, %p78
    %p81 = scmp.ne.s32.totalorder %s64, %s80
    %p82 = scmp.eq.s32.totalorder %s18, 0
    %p83 = por %p81, %p82
    %s84 = ssub.s32 %s19, %s31
    %p85 = scmp.eq.s32.totalorder %s84, 0
    %s87 = sadd.s32 %s86, 1
    %s88 = scalar_select %p85, %s86, %s87
    %p91 = pneg %p85
    %p92 = scmp.eq.s32.totalorder %s12, 1
    %p93 = por %p91, %p92
    %p94 = scmp.ne.s32.totalorder %s86, %s89
    %p95 = scmp.eq.s32.totalorder %s12, 0
    %p96 = por %p94, %p95
    %p97 = scmp.ne.s32.totalorder %s86, %s89
    %p98 = scmp.eq.s32.totalorder %s17, 1
    %p99 = por %p97, %p98
    %p100 = scmp.ne.s32.totalorder %s89, %s90
    %p101 = scmp.eq.s32.totalorder %s17, 0
    %p102 = por %p100, %p101
    %p103 = scmp.ne.s32.totalorder %s89, %s90
    %p104 = scmp.eq.s32.totalorder %s18, 1
    %p105 = por %p103, %p104
    %p107 = scmp.ne.s32.totalorder %s90, %s106
    %p108 = scmp.eq.s32.totalorder %s18, 0
    %p109 = por %p107, %p108
    %s110 = ssub.s32 %s19, %s31
    %p111 = scmp.eq.s32.totalorder %s110, 0
    %s113 = sadd.s32 %s112, 1
    %s114 = scalar_select %p111, %s112, %s113
    %p117 = pneg %p111
    %p118 = scmp.eq.s32.totalorder %s12, 1
    %p119 = por %p117, %p118
    %p120 = scmp.ne.s32.totalorder %s112, %s115
    %p121 = scmp.eq.s32.totalorder %s12, 0
    %p122 = por %p120, %p121
    %p123 = scmp.ne.s32.totalorder %s112, %s115
    %p124 = scmp.eq.s32.totalorder %s17, 1
    %p125 = por %p123, %p124
    %p126 = scmp.ne.s32.totalorder %s115, %s116
    %p127 = scmp.eq.s32.totalorder %s17, 0
    %p128 = por %p126, %p127
    %p129 = scmp.ne.s32.totalorder %s115, %s116
    %p130 = scmp.eq.s32.totalorder %s18, 1
    %p131 = por %p129, %p130
    %p133 = scmp.ne.s32.totalorder %s116, %s132
    %p134 = scmp.eq.s32.totalorder %s18, 0
    %p135 = por %p133, %p134
    %s136 = ssub.s32 %s19, %s31
    %p137 = scmp.eq.s32.totalorder %s136, 0
    %s139 = sadd.s32 %s138, 1
    %s140 = scalar_select %p137, %s138, %s139
    %p143 = pneg %p137
    %p144 = scmp.eq.s32.totalorder %s12, 1
    %p145 = por %p143, %p144
    %p146 = scmp.ne.s32.totalorder %s138, %s141
    %p147 = scmp.eq.s32.totalorder %s12, 0
    %p148 = por %p146, %p147
    %p149 = scmp.ne.s32.totalorder %s138, %s141
    %p150 = scmp.eq.s32.totalorder %s17, 1
    %p151 = por %p149, %p150
    %p152 = scmp.ne.s32.totalorder %s141, %s142
    %p153 = scmp.eq.s32.totalorder %s17, 0
    %p154 = por %p152, %p153
    %p155 = scmp.ne.s32.totalorder %s141, %s142
    %p156 = scmp.eq.s32.totalorder %s18, 1
    %p157 = por %p155, %p156
    %p159 = scmp.ne.s32.totalorder %s142, %s158
    %p160 = scmp.eq.s32.totalorder %s18, 0
    %p161 = por %p159, %p160
    %s163 = sadd.s32 %s162, 1
    %p166 = scmp.eq.s32.totalorder %s12, 1
    %p167 = scmp.ne.s32.totalorder %s162, %s164
    %p168 = scmp.eq.s32.totalorder %s12, 0
    %p169 = por %p167, %p168
    %p170 = scmp.ne.s32.totalorder %s162, %s164
    %p171 = scmp.eq.s32.totalorder %s17, 1
    %p172 = por %p170, %p171
    %p173 = scmp.ne.s32.totalorder %s164, %s165
    %p174 = scmp.eq.s32.totalorder %s17, 0
    %p175 = por %p173, %p174
    %p176 = scmp.ne.s32.totalorder %s164, %s165
    %p177 = scmp.eq.s32.totalorder %s18, 1
    %p178 = por %p176, %p177
    %p180 = scmp.ne.s32.totalorder %s165, %s179
    %p181 = scmp.eq.s32.totalorder %s18, 0
    %p182 = por %p180, %p181
    %p183 = scmp.le.s32.totalorder 1, %s12
    %p184 = scmp.lt.s32.totalorder %s12, 3
    %p185 = pnand %p183, %p184
    %p186 = pneg %p185
    // Predicated region
    $region9: #{dirgnn_forward.1} parent=5 // pred_check
      _
    $region10: #{dirgnn_forward.1} parent=5 // pred_check_branch
      %188 = sbr.rel (%p185) target = $region12
    $region11: #{dirgnn_forward.1} parent=5 // pred_region
      %s189 = ssub.s32 %s12, 1
      // Predicated region
      $region13: #{dirgnn_forward.1} parent=11 // pred_check
        %p190 = pneg %p50
      $region14: #{dirgnn_forward.1} parent=11 // pred_check_branch
        %192 = sbr.rel (%p190) target = $region16
      $region15: #{dirgnn_forward.1} parent=11 // pred_region
        %s193 = smul.u32 32, %s22
        %p194 = scmp.lt.s32.totalorder %s193, 31
        %s195 = scalar_select %p194, %s193, 31
        %s196 = smul.addr %s195, 2
        %s197 = smul.addr %s196, 4
        %s198 = scalar_lea.vmem %s0, %s197
        %s199 = smul.u32 32, %s22
      $region16: #{dirgnn_forward.1} parent=11 // pred_fallthru
        _
    $region12: #{dirgnn_forward.1} parent=5 // pred_fallthru
      _
    %p200 = scmp.lt.s32.totalorder %s12, 2
    // Predicated region
    $region17: #{dirgnn_forward.1} parent=5 // pred_check
      %p201 = pneg %p200
    $region18: #{dirgnn_forward.1} parent=5 // pred_check_branch
      %203 = sbr.rel (%p201) target = $region20
    $region19: #{dirgnn_forward.1} parent=5 // pred_region
      // Predicated region
      $region21: #{dirgnn_forward.1} parent=19 // pred_check
        %p204 = pneg %p70
      $region22: #{dirgnn_forward.1} parent=19 // pred_check_branch
        %206 = sbr.rel (%p204) target = $region24
      $region23: #{dirgnn_forward.1} parent=19 // pred_region
        %p207 = scmp.lt.s32.totalorder %s19, 1
        %s208 = scalar_select %p207, %s19, 1
        %s209 = smul.addr %s208, 16
        %s210 = smul.addr %s209, 4
        %s211 = scalar_lea.vmem %s2, %s210
      $region24: #{dirgnn_forward.1} parent=19 // pred_fallthru
        _
      // Predicated region
      $region25: #{dirgnn_forward.1} parent=19 // pred_check
        %p212 = pneg %p96
      $region26: #{dirgnn_forward.1} parent=19 // pred_check_branch
        %214 = sbr.rel (%p212) target = $region28
      $region27: #{dirgnn_forward.1} parent=19 // pred_region
        %p215 = scmp.lt.s32.totalorder %s19, 1
        %s216 = scalar_select %p215, %s19, 1
        %s217 = scalar_lea.vmem %s3, %s216
      $region28: #{dirgnn_forward.1} parent=19 // pred_fallthru
        _
      // Predicated region
      $region29: #{dirgnn_forward.1} parent=19 // pred_check
        %p218 = pneg %p122
      $region30: #{dirgnn_forward.1} parent=19 // pred_check_branch
        %220 = sbr.rel (%p218) target = $region32
      $region31: #{dirgnn_forward.1} parent=19 // pred_region
        %p221 = scmp.lt.s32.totalorder %s19, 1
        %s222 = scalar_select %p221, %s19, 1
        %s223 = smul.addr %s222, 16
        %s224 = smul.addr %s223, 4
        %s225 = scalar_lea.vmem %s4, %s224
      $region32: #{dirgnn_forward.1} parent=19 // pred_fallthru
        _
      // Predicated region
      $region33: #{dirgnn_forward.1} parent=19 // pred_check
        %p226 = pneg %p148
      $region34: #{dirgnn_forward.1} parent=19 // pred_check_branch
        %228 = sbr.rel (%p226) target = $region36
      $region35: #{dirgnn_forward.1} parent=19 // pred_region
        %p229 = scmp.lt.s32.totalorder %s19, 1
        %s230 = scalar_select %p229, %s19, 1
        %s231 = scalar_lea.vmem %s5, %s230
      $region36: #{dirgnn_forward.1} parent=19 // pred_fallthru
        _
    $region20: #{dirgnn_forward.1} parent=5 // pred_fallthru
      _
    %p232 = scmp.le.s32.totalorder 1, %s12
    %p233 = scmp.lt.s32.totalorder %s12, 3
    %p234 = pnand %p232, %p233
    %p235 = pneg %p234
    // Predicated region
    $region37: #{dirgnn_forward.1} parent=5 // pred_check
      _
    $region38: #{dirgnn_forward.1} parent=5 // pred_check_branch
      %237 = sbr.rel (%p234) target = $region40
    $region39: #{dirgnn_forward.1} parent=5 // pred_region
      %s238 = ssub.s32 %s12, 1
      %s239 = smul.u32 32, %s22
      %p240 = scmp.lt.s32.totalorder %s239, 31
      %s241 = scalar_select %p240, %s239, 31
      %s242 = smul.addr %s241, 2
      %s243 = smul.addr %s242, 4
      %s244 = scalar_lea.vmem %s0, %s243
      %p245 = pneg %p50
      %p246 = pneg %p47
      %p247 = scmp.lt.s32.totalorder %s21, 1
      %s248 = scalar_select %p247, %s21, 1
      %s249 = smul.addr %s248, 16
      %s250 = smul.addr %s249, 4
      %s251 = scalar_lea.vmem %s2, %s250
      %p252 = pneg %p76
      %p253 = pneg %p73
      %p254 = scmp.lt.s32.totalorder %s21, 1
      %s255 = scalar_select %p254, %s21, 1
      %s256 = scalar_lea.vmem %s3, %s255
      %p257 = pneg %p102
      %p258 = pneg %p99
      %p259 = scmp.lt.s32.totalorder %s21, 1
      %s260 = scalar_select %p259, %s21, 1
      %s261 = smul.addr %s260, 16
      %s262 = smul.addr %s261, 4
      %s263 = scalar_lea.vmem %s4, %s262
      %p264 = pneg %p128
      %p265 = pneg %p125
      %p266 = scmp.lt.s32.totalorder %s21, 1
      %s267 = scalar_select %p266, %s21, 1
      %s268 = scalar_lea.vmem %s5, %s267
      %p269 = pneg %p154
      %p270 = pneg %p151
      %p271 = pneg %p175
      %p272 = pneg %p172
      %s273 = smul.u32 32, %s22
      %p274 = scmp.lt.s32.totalorder %s273, 31
      %s275 = scalar_select %p274, %s273, 31
      %s276 = smul.addr %s275, 2
      %s277 = smul.addr %s276, 4
      %s278 = scalar_lea.vmem %s0, %s277
      %s279 = smul.u32 32, %s22
      %p280 = scmp.lt.s32.totalorder %s21, 1
      %s281 = scalar_select %p280, %s21, 1
      %s282 = smul.addr %s281, 16
      %s283 = smul.addr %s282, 4
      %s284 = scalar_lea.vmem %s2, %s283
      %p285 = scmp.lt.s32.totalorder %s21, 1
      %s286 = scalar_select %p285, %s21, 1
      %s287 = scalar_lea.vmem %s3, %s286
      %p288 = scmp.lt.s32.totalorder %s21, 1
      %s289 = scalar_select %p288, %s21, 1
      %s290 = smul.addr %s289, 16
      %s291 = smul.addr %s290, 4
      %s292 = scalar_lea.vmem %s4, %s291
      %p293 = scmp.lt.s32.totalorder %s21, 1
      %s294 = scalar_select %p293, %s21, 1
      %s295 = scalar_lea.vmem %s5, %s294
      %s296 = smul.u32 %s22, 256
      %p297 = scmp.eq.s32.totalorder %s22, 0
      // Predicated region
      $region41: #{dirgnn_forward.1} parent=39 // pred_check
        %p298 = pneg %p297
      $region42: #{dirgnn_forward.1} parent=39 // pred_check_branch
        %300 = sbr.rel (%p298) target = $region44
      $region43: #{dirgnn_forward.1} parent=39 // pred_region
        %p301 = scmp.eq.s32.totalorder %s21, 0
        // Predicated region
        $region45: #{dirgnn_forward.1} parent=43 // pred_check
          %p302 = pneg %p301
        $region46: #{dirgnn_forward.1} parent=43 // pred_check_branch
          %304 = sbr.rel (%p302) target = $region48
        $region47: #{dirgnn_forward.1} parent=43 // pred_region
          // Predicated region
          $region49: #{dirgnn_forward.1} parent=47 // pred_check
            _
          $region50: #{dirgnn_forward.1} parent=47 // pred_check_branch
            %306 = sbr.rel (0) target = $region52
          $region51: #{dirgnn_forward.1} parent=47 // pred_region
            loop: start=0, step=1, limit=1
            $region53: #{dirgnn_forward.1} parent=51 // loop_pre_header
              _
            $region54: #{dirgnn_forward.1} parent=51 // loop_header
              %s308 = sphi 0, %s312
              %p309 = scmp.ge.s32.totalorder %s308, 1
              %s313 = sphi %s1, %s1
              %s314 = sphi [#allocation2], [#allocation2]
            $region55: #{dirgnn_forward.1} parent=51 // loop_header_branch
              %311 = sbr.rel (%p309) target = $region59
            $region56: #{dirgnn_forward.1} parent=51 // loop_body
              %v315 = vld [vmem:[%s313] sm:$0xff]
              %316 = vst [vmem:[%s314] sm:$0xff] %v315
              %v317 = vld [vmem:[%s313 + $0x8] sm:$0xff]
              %318 = vst [vmem:[%s314 + $0x8] sm:$0xff] %v317
              %v319 = vld [vmem:[%s313 + $0x10] sm:$0xff]
              %320 = vst [vmem:[%s314 + $0x10] sm:$0xff] %v319
              %v321 = vld [vmem:[%s313 + $0x18] sm:$0xff]
              %322 = vst [vmem:[%s314 + $0x18] sm:$0xff] %v321
              %v323 = vld [vmem:[%s313 + $0x20] sm:$0xff]
              %324 = vst [vmem:[%s314 + $0x20] sm:$0xff] %v323
              %v325 = vld [vmem:[%s313 + $0x28] sm:$0xff]
              %326 = vst [vmem:[%s314 + $0x28] sm:$0xff] %v325
              %v327 = vld [vmem:[%s313 + $0x30] sm:$0xff]
              %328 = vst [vmem:[%s314 + $0x30] sm:$0xff] %v327
              %v329 = vld [vmem:[%s313 + $0x38] sm:$0xff]
              %330 = vst [vmem:[%s314 + $0x38] sm:$0xff] %v329
              %v331 = vld [vmem:[%s313 + $0x40] sm:$0xff]
              %332 = vst [vmem:[%s314 + $0x40] sm:$0xff] %v331
              %v333 = vld [vmem:[%s313 + $0x48] sm:$0xff]
              %334 = vst [vmem:[%s314 + $0x48] sm:$0xff] %v333
              %v335 = vld [vmem:[%s313 + $0x50] sm:$0xff]
              %336 = vst [vmem:[%s314 + $0x50] sm:$0xff] %v335
              %v337 = vld [vmem:[%s313 + $0x58] sm:$0xff]
              %338 = vst [vmem:[%s314 + $0x58] sm:$0xff] %v337
              %v339 = vld [vmem:[%s313 + $0x60] sm:$0xff]
              %340 = vst [vmem:[%s314 + $0x60] sm:$0xff] %v339
              %v341 = vld [vmem:[%s313 + $0x68] sm:$0xff]
              %342 = vst [vmem:[%s314 + $0x68] sm:$0xff] %v341
              %v343 = vld [vmem:[%s313 + $0x70] sm:$0xff]
              %344 = vst [vmem:[%s314 + $0x70] sm:$0xff] %v343
              %v345 = vld [vmem:[%s313 + $0x78] sm:$0xff]
              %346 = vst [vmem:[%s314 + $0x78] sm:$0xff] %v345
              %v347 = vld [vmem:[%s313 + $0x80] sm:$0xff]
              %348 = vst [vmem:[%s314 + $0x80] sm:$0xff] %v347
              %v349 = vld [vmem:[%s313 + $0x88] sm:$0xff]
              %350 = vst [vmem:[%s314 + $0x88] sm:$0xff] %v349
              %v351 = vld [vmem:[%s313 + $0x90] sm:$0xff]
              %352 = vst [vmem:[%s314 + $0x90] sm:$0xff] %v351
              %v353 = vld [vmem:[%s313 + $0x98] sm:$0xff]
              %354 = vst [vmem:[%s314 + $0x98] sm:$0xff] %v353
              %v355 = vld [vmem:[%s313 + $0xa0] sm:$0xff]
              %356 = vst [vmem:[%s314 + $0xa0] sm:$0xff] %v355
              %v357 = vld [vmem:[%s313 + $0xa8] sm:$0xff]
              %358 = vst [vmem:[%s314 + $0xa8] sm:$0xff] %v357
              %v359 = vld [vmem:[%s313 + $0xb0] sm:$0xff]
              %360 = vst [vmem:[%s314 + $0xb0] sm:$0xff] %v359
              %v361 = vld [vmem:[%s313 + $0xb8] sm:$0xff]
              %362 = vst [vmem:[%s314 + $0xb8] sm:$0xff] %v361
              %v363 = vld [vmem:[%s313 + $0xc0] sm:$0xff]
              %364 = vst [vmem:[%s314 + $0xc0] sm:$0xff] %v363
              %v365 = vld [vmem:[%s313 + $0xc8] sm:$0xff]
              %366 = vst [vmem:[%s314 + $0xc8] sm:$0xff] %v365
              %v367 = vld [vmem:[%s313 + $0xd0] sm:$0xff]
              %368 = vst [vmem:[%s314 + $0xd0] sm:$0xff] %v367
              %v369 = vld [vmem:[%s313 + $0xd8] sm:$0xff]
              %370 = vst [vmem:[%s314 + $0xd8] sm:$0xff] %v369
              %v371 = vld [vmem:[%s313 + $0xe0] sm:$0xff]
              %372 = vst [vmem:[%s314 + $0xe0] sm:$0xff] %v371
              %v373 = vld [vmem:[%s313 + $0xe8] sm:$0xff]
              %374 = vst [vmem:[%s314 + $0xe8] sm:$0xff] %v373
              %v375 = vld [vmem:[%s313 + $0xf0] sm:$0xff]
              %376 = vst [vmem:[%s314 + $0xf0] sm:$0xff] %v375
              %v377 = vld [vmem:[%s313 + $0xf8] sm:$0xff]
              %378 = vst [vmem:[%s314 + $0xf8] sm:$0xff] %v377
            $region57: #{dirgnn_forward.1} parent=51 // loop_footer
              %s312 = sadd.s32 1, %s308
            $region58: #{dirgnn_forward.1} parent=51 // loop_footer_branch
              %307 = sbr.rel target = $region54
            $region59: #{dirgnn_forward.1} parent=51 // loop_exit
              _
          $region52: #{dirgnn_forward.1} parent=47 // pred_fallthru
            _
          // Predicated region
          $region60: #{dirgnn_forward.1} parent=47 // pred_check
            _
          $region61: #{dirgnn_forward.1} parent=47 // pred_check_branch
            %380 = sbr.rel target = $region63
          $region62: #{dirgnn_forward.1} parent=47 // pred_region
            _
          $region63: #{dirgnn_forward.1} parent=47 // pred_fallthru
            _
          // Predicated region
          $region64: #{dirgnn_forward.1} parent=47 // pred_check
            _
          $region65: #{dirgnn_forward.1} parent=47 // pred_check_branch
            %383 = sbr.rel (0) target = $region67
          $region66: #{dirgnn_forward.1} parent=47 // pred_region
            %384 = vsyncadd [#allocation6], 4096
          $region67: #{dirgnn_forward.1} parent=47 // pred_fallthru
            _
          %s385 = smul.u32 256, 1
          %s386 = sshll.u32 %s385, 4
          %387 = dma.done [#allocation6], %s386
        $region48: #{dirgnn_forward.1} parent=43 // pred_fallthru
          _
        %v388 = vld [vmem:[#allocation2] sm:$0xff]
        %v389 = vld [vmem:[#allocation2 + $0x8] sm:$0xff]
        %v390 = vld [vmem:[#allocation2 + $0x10] sm:$0xff]
        %v391 = vld [vmem:[#allocation2 + $0x18] sm:$0xff]
        %v392 = vld [vmem:[#allocation2 + $0x20] sm:$0xff]
        %v393 = vld [vmem:[#allocation2 + $0x28] sm:$0xff]
        %v394 = vld [vmem:[#allocation2 + $0x30] sm:$0xff]
        %v395 = vld [vmem:[#allocation2 + $0x38] sm:$0xff]
        %v396 = vld [vmem:[#allocation2 + $0x40] sm:$0xff]
        %v397 = vld [vmem:[#allocation2 + $0x48] sm:$0xff]
        %v398 = vld [vmem:[#allocation2 + $0x50] sm:$0xff]
        %v399 = vld [vmem:[#allocation2 + $0x58] sm:$0xff]
        %v400 = vld [vmem:[#allocation2 + $0x60] sm:$0xff]
        %v401 = vld [vmem:[#allocation2 + $0x68] sm:$0xff]
        %v402 = vld [vmem:[#allocation2 + $0x70] sm:$0xff]
        %v403 = vld [vmem:[#allocation2 + $0x78] sm:$0xff]
        %v404 = vld [vmem:[#allocation2 + $0x80] sm:$0xff]
        %v405 = vld [vmem:[#allocation2 + $0x88] sm:$0xff]
        %v406 = vld [vmem:[#allocation2 + $0x90] sm:$0xff]
        %v407 = vld [vmem:[#allocation2 + $0x98] sm:$0xff]
        %v408 = vld [vmem:[#allocation2 + $0xa0] sm:$0xff]
        %v409 = vld [vmem:[#allocation2 + $0xa8] sm:$0xff]
        %v410 = vld [vmem:[#allocation2 + $0xb0] sm:$0xff]
        %v411 = vld [vmem:[#allocation2 + $0xb8] sm:$0xff]
        %v412 = vld [vmem:[#allocation2 + $0xc0] sm:$0xff]
        %v413 = vld [vmem:[#allocation2 + $0xc8] sm:$0xff]
        %v414 = vld [vmem:[#allocation2 + $0xd0] sm:$0xff]
        %v415 = vld [vmem:[#allocation2 + $0xd8] sm:$0xff]
        %v416 = vld [vmem:[#allocation2 + $0xe0] sm:$0xff]
        %v417 = vld [vmem:[#allocation2 + $0xe8] sm:$0xff]
        %v418 = vld [vmem:[#allocation2 + $0xf0] sm:$0xff]
        %v419 = vld [vmem:[#allocation2 + $0xf8] sm:$0xff]
        %v420 = vpack.c.bf16 %v389, %v388
        %v421 = vpack.c.bf16 %v391, %v390
        %v422 = vpack.c.bf16 %v393, %v392
        %v423 = vpack.c.bf16 %v395, %v394
        %v424 = vpack.c.bf16 %v397, %v396
        %v425 = vpack.c.bf16 %v399, %v398
        %v426 = vpack.c.bf16 %v401, %v400
        %v427 = vpack.c.bf16 %v403, %v402
        %v428 = vpack.c.bf16 %v405, %v404
        %v429 = vpack.c.bf16 %v407, %v406
        %v430 = vpack.c.bf16 %v409, %v408
        %v431 = vpack.c.bf16 %v411, %v410
        %v432 = vpack.c.bf16 %v413, %v412
        %v433 = vpack.c.bf16 %v415, %v414
        %v434 = vpack.c.bf16 %v417, %v416
        %v435 = vpack.c.bf16 %v419, %v418
        %v436 = vld [vmem:[%s284] sm:$0xf]
        %v437 = vld [vmem:[%s284 + $0x4] sm:$0xf]
        %v438 = vld [vmem:[%s284 + $0x8] sm:$0xf]
        %v439 = vld [vmem:[%s284 + $0xc] sm:$0xf]
        %v440 = vld [vmem:[%s284 + $0x10] sm:$0xf]
        %v441 = vld [vmem:[%s284 + $0x14] sm:$0xf]
        %v442 = vld [vmem:[%s284 + $0x18] sm:$0xf]
        %v443 = vld [vmem:[%s284 + $0x1c] sm:$0xf]
        %v444 = vld [vmem:[%s284 + $0x20] sm:$0xf]
        %v445 = vld [vmem:[%s284 + $0x24] sm:$0xf]
        %v446 = vld [vmem:[%s284 + $0x28] sm:$0xf]
        %v447 = vld [vmem:[%s284 + $0x2c] sm:$0xf]
        %v448 = vld [vmem:[%s284 + $0x30] sm:$0xf]
        %v449 = vld [vmem:[%s284 + $0x34] sm:$0xf]
        %v450 = vld [vmem:[%s284 + $0x38] sm:$0xf]
        %v451 = vld [vmem:[%s284 + $0x3c] sm:$0xf]
        %v468 = vunpack.c.l.b16 %v436
        %v469 = vunpack.c.l.b16 %v437
        %v470 = vunpack.c.l.b16 %v438
        %v471 = vunpack.c.l.b16 %v439
        %v472 = vunpack.c.l.b16 %v440
        %v473 = vunpack.c.l.b16 %v441
        %v474 = vunpack.c.l.b16 %v442
        %v475 = vunpack.c.l.b16 %v443
        %v476 = vunpack.c.l.b16 %v444
        %v477 = vunpack.c.l.b16 %v445
        %v478 = vunpack.c.l.b16 %v446
        %v479 = vunpack.c.l.b16 %v447
        %v480 = vunpack.c.l.b16 %v448
        %v481 = vunpack.c.l.b16 %v449
        %v482 = vunpack.c.l.b16 %v450
        %v483 = vunpack.c.l.b16 %v451
        %v484 = vpack.c.b16 %v469, %v468
        %v485 = vpack.c.b16 %v471, %v470
        %v486 = vpack.c.b16 %v473, %v472
        %v487 = vpack.c.b16 %v475, %v474
        %v488 = vpack.c.b16 %v477, %v476
        %v489 = vpack.c.b16 %v479, %v478
        %v490 = vpack.c.b16 %v481, %v480
        %v491 = vpack.c.b16 %v483, %v482
        %500 = vmatpush.bf16.msra.mxu0 %v491
        %501 = vmatpush.bf16.msra.mxu0 %v490
        %502 = vmatpush.bf16.msra.mxu0 %v489
        %503 = vmatpush.bf16.msra.mxu0 %v488
        %504 = vmatpush.bf16.msra.mxu0 %v487
        %505 = vmatpush.bf16.msra.mxu0 %v486
        %506 = vmatpush.bf16.msra.mxu0 %v485
        %507 = vmatpush.bf16.msra.mxu0 %v484
        %508 = vmatmul.bf16.gmra.mxu0 %v420
        %v509 = vpop.f32.mrf.mxu0
        %v510 = vadd.f32 0.0, %v509
        %v511 = vpop.f32.mrf.mxu0
        %v512 = vadd.f32 0.0, %v511
        %513 = vmatmul.bf16.gmra.mxu0 %v421
        %v514 = vpop.f32.mrf.mxu0
        %v515 = vadd.f32 0.0, %v514
        %v516 = vpop.f32.mrf.mxu0
        %v517 = vadd.f32 0.0, %v516
        %518 = vmatmul.bf16.gmra.mxu0 %v422
        %v519 = vpop.f32.mrf.mxu0
        %v520 = vadd.f32 0.0, %v519
        %v521 = vpop.f32.mrf.mxu0
        %v522 = vadd.f32 0.0, %v521
        %523 = vmatmul.bf16.gmra.mxu0 %v423
        %v524 = vpop.f32.mrf.mxu0
        %v525 = vadd.f32 0.0, %v524
        %v526 = vpop.f32.mrf.mxu0
        %v527 = vadd.f32 0.0, %v526
        %528 = vmatmul.bf16.gmra.mxu0 %v424
        %v529 = vpop.f32.mrf.mxu0
        %v530 = vadd.f32 0.0, %v529
        %v531 = vpop.f32.mrf.mxu0
        %v532 = vadd.f32 0.0, %v531
        %533 = vmatmul.bf16.gmra.mxu0 %v425
        %v534 = vpop.f32.mrf.mxu0
        %v535 = vadd.f32 0.0, %v534
        %v536 = vpop.f32.mrf.mxu0
        %v537 = vadd.f32 0.0, %v536
        %538 = vmatmul.bf16.gmra.mxu0 %v426
        %v539 = vpop.f32.mrf.mxu0
        %v540 = vadd.f32 0.0, %v539
        %v541 = vpop.f32.mrf.mxu0
        %v542 = vadd.f32 0.0, %v541
        %543 = vmatmul.bf16.gmra.mxu0 %v427
        %v544 = vpop.f32.mrf.mxu0
        %v545 = vadd.f32 0.0, %v544
        %v546 = vpop.f32.mrf.mxu0
        %v547 = vadd.f32 0.0, %v546
        %548 = vmatmul.bf16.gmra.mxu0 %v428
        %v549 = vpop.f32.mrf.mxu0
        %v550 = vadd.f32 0.0, %v549
        %v551 = vpop.f32.mrf.mxu0
        %v552 = vadd.f32 0.0, %v551
        %553 = vmatmul.bf16.gmra.mxu0 %v429
        %v554 = vpop.f32.mrf.mxu0
        %v555 = vadd.f32 0.0, %v554
        %v556 = vpop.f32.mrf.mxu0
        %v557 = vadd.f32 0.0, %v556
        %558 = vmatmul.bf16.gmra.mxu0 %v430
        %v559 = vpop.f32.mrf.mxu0
        %v560 = vadd.f32 0.0, %v559
        %v561 = vpop.f32.mrf.mxu0
        %v562 = vadd.f32 0.0, %v561
        %563 = vmatmul.bf16.gmra.mxu0 %v431
        %v564 = vpop.f32.mrf.mxu0
        %v565 = vadd.f32 0.0, %v564
        %v566 = vpop.f32.mrf.mxu0
        %v567 = vadd.f32 0.0, %v566
        %568 = vmatmul.bf16.gmra.mxu0 %v432
        %v569 = vpop.f32.mrf.mxu0
        %v570 = vadd.f32 0.0, %v569
        %v571 = vpop.f32.mrf.mxu0
        %v572 = vadd.f32 0.0, %v571
        %573 = vmatmul.bf16.gmra.mxu0 %v433
        %v574 = vpop.f32.mrf.mxu0
        %v575 = vadd.f32 0.0, %v574
        %v576 = vpop.f32.mrf.mxu0
        %v577 = vadd.f32 0.0, %v576
        %578 = vmatmul.bf16.gmra.mxu0 %v434
        %v579 = vpop.f32.mrf.mxu0
        %v580 = vadd.f32 0.0, %v579
        %v581 = vpop.f32.mrf.mxu0
        %v582 = vadd.f32 0.0, %v581
        %583 = vmatmul.bf16.gmra.mxu0 %v435
        %v584 = vpop.f32.mrf.mxu0
        %v585 = vadd.f32 0.0, %v584
        %v586 = vpop.f32.mrf.mxu0
        %v587 = vadd.f32 0.0, %v586
        %588 = vdwg.mxu0
        %v589 = vpack.c.bf16 %v510, %v510
        %v590 = vpack.c.bf16 %v512, %v512
        %v591 = vpack.c.bf16 %v515, %v515
        %v592 = vpack.c.bf16 %v517, %v517
        %v593 = vpack.c.bf16 %v520, %v520
        %v594 = vpack.c.bf16 %v522, %v522
        %v595 = vpack.c.bf16 %v525, %v525
        %v596 = vpack.c.bf16 %v527, %v527
        %v597 = vpack.c.bf16 %v530, %v530
        %v598 = vpack.c.bf16 %v532, %v532
        %v599 = vpack.c.bf16 %v535, %v535
        %v600 = vpack.c.bf16 %v537, %v537
        %v601 = vpack.c.bf16 %v540, %v540
        %v602 = vpack.c.bf16 %v542, %v542
        %v603 = vpack.c.bf16 %v545, %v545
        %v604 = vpack.c.bf16 %v547, %v547
        %v605 = vpack.c.bf16 %v550, %v550
        %v606 = vpack.c.bf16 %v552, %v552
        %v607 = vpack.c.bf16 %v555, %v555
        %v608 = vpack.c.bf16 %v557, %v557
        %v609 = vpack.c.bf16 %v560, %v560
        %v610 = vpack.c.bf16 %v562, %v562
        %v611 = vpack.c.bf16 %v565, %v565
        %v612 = vpack.c.bf16 %v567, %v567
        %v613 = vpack.c.bf16 %v570, %v570
        %v614 = vpack.c.bf16 %v572, %v572
        %v615 = vpack.c.bf16 %v575, %v575
        %v616 = vpack.c.bf16 %v577, %v577
        %v617 = vpack.c.bf16 %v580, %v580
        %v618 = vpack.c.bf16 %v582, %v582
        %v619 = vpack.c.bf16 %v585, %v585
        %v620 = vpack.c.bf16 %v587, %v587
        %621 = vst [vmem:[#allocation3] sm:$0xf] %v589
        %622 = vst [vmem:[#allocation3 + $0x4] sm:$0xf] %v590
        %623 = vst [vmem:[#allocation3 + $0x8] sm:$0xf] %v591
        %624 = vst [vmem:[#allocation3 + $0xc] sm:$0xf] %v592
        %625 = vst [vmem:[#allocation3 + $0x10] sm:$0xf] %v593
        %626 = vst [vmem:[#allocation3 + $0x14] sm:$0xf] %v594
        %627 = vst [vmem:[#allocation3 + $0x18] sm:$0xf] %v595
        %628 = vst [vmem:[#allocation3 + $0x1c] sm:$0xf] %v596
        %629 = vst [vmem:[#allocation3 + $0x20] sm:$0xf] %v597
        %630 = vst [vmem:[#allocation3 + $0x24] sm:$0xf] %v598
        %631 = vst [vmem:[#allocation3 + $0x28] sm:$0xf] %v599
        %632 = vst [vmem:[#allocation3 + $0x2c] sm:$0xf] %v600
        %633 = vst [vmem:[#allocation3 + $0x30] sm:$0xf] %v601
        %634 = vst [vmem:[#allocation3 + $0x34] sm:$0xf] %v602
        %635 = vst [vmem:[#allocation3 + $0x38] sm:$0xf] %v603
        %636 = vst [vmem:[#allocation3 + $0x3c] sm:$0xf] %v604
        %637 = vst [vmem:[#allocation3 + $0x40] sm:$0xf] %v605
        %638 = vst [vmem:[#allocation3 + $0x44] sm:$0xf] %v606
        %639 = vst [vmem:[#allocation3 + $0x48] sm:$0xf] %v607
        %640 = vst [vmem:[#allocation3 + $0x4c] sm:$0xf] %v608
        %641 = vst [vmem:[#allocation3 + $0x50] sm:$0xf] %v609
        %642 = vst [vmem:[#allocation3 + $0x54] sm:$0xf] %v610
        %643 = vst [vmem:[#allocation3 + $0x58] sm:$0xf] %v611
        %644 = vst [vmem:[#allocation3 + $0x5c] sm:$0xf] %v612
        %645 = vst [vmem:[#allocation3 + $0x60] sm:$0xf] %v613
        %646 = vst [vmem:[#allocation3 + $0x64] sm:$0xf] %v614
        %647 = vst [vmem:[#allocation3 + $0x68] sm:$0xf] %v615
        %648 = vst [vmem:[#allocation3 + $0x6c] sm:$0xf] %v616
        %649 = vst [vmem:[#allocation3 + $0x70] sm:$0xf] %v617
        %650 = vst [vmem:[#allocation3 + $0x74] sm:$0xf] %v618
        %651 = vst [vmem:[#allocation3 + $0x78] sm:$0xf] %v619
        %652 = vst [vmem:[#allocation3 + $0x7c] sm:$0xf] %v620
        %v653 = vld [vmem:[%s292] sm:$0xf]
        %v654 = vld [vmem:[%s292 + $0x4] sm:$0xf]
        %v655 = vld [vmem:[%s292 + $0x8] sm:$0xf]
        %v656 = vld [vmem:[%s292 + $0xc] sm:$0xf]
        %v657 = vld [vmem:[%s292 + $0x10] sm:$0xf]
        %v658 = vld [vmem:[%s292 + $0x14] sm:$0xf]
        %v659 = vld [vmem:[%s292 + $0x18] sm:$0xf]
        %v660 = vld [vmem:[%s292 + $0x1c] sm:$0xf]
        %v661 = vld [vmem:[%s292 + $0x20] sm:$0xf]
        %v662 = vld [vmem:[%s292 + $0x24] sm:$0xf]
        %v663 = vld [vmem:[%s292 + $0x28] sm:$0xf]
        %v664 = vld [vmem:[%s292 + $0x2c] sm:$0xf]
        %v665 = vld [vmem:[%s292 + $0x30] sm:$0xf]
        %v666 = vld [vmem:[%s292 + $0x34] sm:$0xf]
        %v667 = vld [vmem:[%s292 + $0x38] sm:$0xf]
        %v668 = vld [vmem:[%s292 + $0x3c] sm:$0xf]
        %v685 = vunpack.c.l.b16 %v653
        %v686 = vunpack.c.l.b16 %v654
        %v687 = vunpack.c.l.b16 %v655
        %v688 = vunpack.c.l.b16 %v656
        %v689 = vunpack.c.l.b16 %v657
        %v690 = vunpack.c.l.b16 %v658
        %v691 = vunpack.c.l.b16 %v659
        %v692 = vunpack.c.l.b16 %v660
        %v693 = vunpack.c.l.b16 %v661
        %v694 = vunpack.c.l.b16 %v662
        %v695 = vunpack.c.l.b16 %v663
        %v696 = vunpack.c.l.b16 %v664
        %v697 = vunpack.c.l.b16 %v665
        %v698 = vunpack.c.l.b16 %v666
        %v699 = vunpack.c.l.b16 %v667
        %v700 = vunpack.c.l.b16 %v668
        %v701 = vpack.c.b16 %v686, %v685
        %v702 = vpack.c.b16 %v688, %v687
        %v703 = vpack.c.b16 %v690, %v689
        %v704 = vpack.c.b16 %v692, %v691
        %v705 = vpack.c.b16 %v694, %v693
        %v706 = vpack.c.b16 %v696, %v695
        %v707 = vpack.c.b16 %v698, %v697
        %v708 = vpack.c.b16 %v700, %v699
        %717 = vmatpush.bf16.msra.mxu0 %v708
        %718 = vmatpush.bf16.msra.mxu0 %v707
        %719 = vmatpush.bf16.msra.mxu0 %v706
        %720 = vmatpush.bf16.msra.mxu0 %v705
        %721 = vmatpush.bf16.msra.mxu0 %v704
        %722 = vmatpush.bf16.msra.mxu0 %v703
        %723 = vmatpush.bf16.msra.mxu0 %v702
        %724 = vmatpush.bf16.msra.mxu0 %v701
        %725 = vmatmul.bf16.gmra.mxu0 %v420
        %v726 = vpop.f32.mrf.mxu0
        %v727 = vadd.f32 0.0, %v726
        %v728 = vpop.f32.mrf.mxu0
        %v729 = vadd.f32 0.0, %v728
        %730 = vmatmul.bf16.gmra.mxu0 %v421
        %v731 = vpop.f32.mrf.mxu0
        %v732 = vadd.f32 0.0, %v731
        %v733 = vpop.f32.mrf.mxu0
        %v734 = vadd.f32 0.0, %v733
        %735 = vmatmul.bf16.gmra.mxu0 %v422
        %v736 = vpop.f32.mrf.mxu0
        %v737 = vadd.f32 0.0, %v736
        %v738 = vpop.f32.mrf.mxu0
        %v739 = vadd.f32 0.0, %v738
        %740 = vmatmul.bf16.gmra.mxu0 %v423
        %v741 = vpop.f32.mrf.mxu0
        %v742 = vadd.f32 0.0, %v741
        %v743 = vpop.f32.mrf.mxu0
        %v744 = vadd.f32 0.0, %v743
        %745 = vmatmul.bf16.gmra.mxu0 %v424
        %v746 = vpop.f32.mrf.mxu0
        %v747 = vadd.f32 0.0, %v746
        %v748 = vpop.f32.mrf.mxu0
        %v749 = vadd.f32 0.0, %v748
        %750 = vmatmul.bf16.gmra.mxu0 %v425
        %v751 = vpop.f32.mrf.mxu0
        %v752 = vadd.f32 0.0, %v751
        %v753 = vpop.f32.mrf.mxu0
        %v754 = vadd.f32 0.0, %v753
        %755 = vmatmul.bf16.gmra.mxu0 %v426
        %v756 = vpop.f32.mrf.mxu0
        %v757 = vadd.f32 0.0, %v756
        %v758 = vpop.f32.mrf.mxu0
        %v759 = vadd.f32 0.0, %v758
        %760 = vmatmul.bf16.gmra.mxu0 %v427
        %v761 = vpop.f32.mrf.mxu0
        %v762 = vadd.f32 0.0, %v761
        %v763 = vpop.f32.mrf.mxu0
        %v764 = vadd.f32 0.0, %v763
        %765 = vmatmul.bf16.gmra.mxu0 %v428
        %v766 = vpop.f32.mrf.mxu0
        %v767 = vadd.f32 0.0, %v766
        %v768 = vpop.f32.mrf.mxu0
        %v769 = vadd.f32 0.0, %v768
        %770 = vmatmul.bf16.gmra.mxu0 %v429
        %v771 = vpop.f32.mrf.mxu0
        %v772 = vadd.f32 0.0, %v771
        %v773 = vpop.f32.mrf.mxu0
        %v774 = vadd.f32 0.0, %v773
        %775 = vmatmul.bf16.gmra.mxu0 %v430
        %v776 = vpop.f32.mrf.mxu0
        %v777 = vadd.f32 0.0, %v776
        %v778 = vpop.f32.mrf.mxu0
        %v779 = vadd.f32 0.0, %v778
        %780 = vmatmul.bf16.gmra.mxu0 %v431
        %v781 = vpop.f32.mrf.mxu0
        %v782 = vadd.f32 0.0, %v781
        %v783 = vpop.f32.mrf.mxu0
        %v784 = vadd.f32 0.0, %v783
        %785 = vmatmul.bf16.gmra.mxu0 %v432
        %v786 = vpop.f32.mrf.mxu0
        %v787 = vadd.f32 0.0, %v786
        %v788 = vpop.f32.mrf.mxu0
        %v789 = vadd.f32 0.0, %v788
        %790 = vmatmul.bf16.gmra.mxu0 %v433
        %v791 = vpop.f32.mrf.mxu0
        %v792 = vadd.f32 0.0, %v791
        %v793 = vpop.f32.mrf.mxu0
        %v794 = vadd.f32 0.0, %v793
        %795 = vmatmul.bf16.gmra.mxu0 %v434
        %v796 = vpop.f32.mrf.mxu0
        %v797 = vadd.f32 0.0, %v796
        %v798 = vpop.f32.mrf.mxu0
        %v799 = vadd.f32 0.0, %v798
        %800 = vmatmul.bf16.gmra.mxu0 %v435
        %v801 = vpop.f32.mrf.mxu0
        %v802 = vadd.f32 0.0, %v801
        %v803 = vpop.f32.mrf.mxu0
        %v804 = vadd.f32 0.0, %v803
        %805 = vdwg.mxu0
        %v806 = vpack.c.bf16 %v727, %v727
        %v807 = vpack.c.bf16 %v729, %v729
        %v808 = vpack.c.bf16 %v732, %v732
        %v809 = vpack.c.bf16 %v734, %v734
        %v810 = vpack.c.bf16 %v737, %v737
        %v811 = vpack.c.bf16 %v739, %v739
        %v812 = vpack.c.bf16 %v742, %v742
        %v813 = vpack.c.bf16 %v744, %v744
        %v814 = vpack.c.bf16 %v747, %v747
        %v815 = vpack.c.bf16 %v749, %v749
        %v816 = vpack.c.bf16 %v752, %v752
        %v817 = vpack.c.bf16 %v754, %v754
        %v818 = vpack.c.bf16 %v757, %v757
        %v819 = vpack.c.bf16 %v759, %v759
        %v820 = vpack.c.bf16 %v762, %v762
        %v821 = vpack.c.bf16 %v764, %v764
        %v822 = vpack.c.bf16 %v767, %v767
        %v823 = vpack.c.bf16 %v769, %v769
        %v824 = vpack.c.bf16 %v772, %v772
        %v825 = vpack.c.bf16 %v774, %v774
        %v826 = vpack.c.bf16 %v777, %v777
        %v827 = vpack.c.bf16 %v779, %v779
        %v828 = vpack.c.bf16 %v782, %v782
        %v829 = vpack.c.bf16 %v784, %v784
        %v830 = vpack.c.bf16 %v787, %v787
        %v831 = vpack.c.bf16 %v789, %v789
        %v832 = vpack.c.bf16 %v792, %v792
        %v833 = vpack.c.bf16 %v794, %v794
        %v834 = vpack.c.bf16 %v797, %v797
        %v835 = vpack.c.bf16 %v799, %v799
        %v836 = vpack.c.bf16 %v802, %v802
        %v837 = vpack.c.bf16 %v804, %v804
        %838 = vst [vmem:[#allocation4] sm:$0xf] %v806
        %839 = vst [vmem:[#allocation4 + $0x4] sm:$0xf] %v807
        %840 = vst [vmem:[#allocation4 + $0x8] sm:$0xf] %v808
        %841 = vst [vmem:[#allocation4 + $0xc] sm:$0xf] %v809
        %842 = vst [vmem:[#allocation4 + $0x10] sm:$0xf] %v810
        %843 = vst [vmem:[#allocation4 + $0x14] sm:$0xf] %v811
        %844 = vst [vmem:[#allocation4 + $0x18] sm:$0xf] %v812
        %845 = vst [vmem:[#allocation4 + $0x1c] sm:$0xf] %v813
        %846 = vst [vmem:[#allocation4 + $0x20] sm:$0xf] %v814
        %847 = vst [vmem:[#allocation4 + $0x24] sm:$0xf] %v815
        %848 = vst [vmem:[#allocation4 + $0x28] sm:$0xf] %v816
        %849 = vst [vmem:[#allocation4 + $0x2c] sm:$0xf] %v817
        %850 = vst [vmem:[#allocation4 + $0x30] sm:$0xf] %v818
        %851 = vst [vmem:[#allocation4 + $0x34] sm:$0xf] %v819
        %852 = vst [vmem:[#allocation4 + $0x38] sm:$0xf] %v820
        %853 = vst [vmem:[#allocation4 + $0x3c] sm:$0xf] %v821
        %854 = vst [vmem:[#allocation4 + $0x40] sm:$0xf] %v822
        %855 = vst [vmem:[#allocation4 + $0x44] sm:$0xf] %v823
        %856 = vst [vmem:[#allocation4 + $0x48] sm:$0xf] %v824
        %857 = vst [vmem:[#allocation4 + $0x4c] sm:$0xf] %v825
        %858 = vst [vmem:[#allocation4 + $0x50] sm:$0xf] %v826
        %859 = vst [vmem:[#allocation4 + $0x54] sm:$0xf] %v827
        %860 = vst [vmem:[#allocation4 + $0x58] sm:$0xf] %v828
        %861 = vst [vmem:[#allocation4 + $0x5c] sm:$0xf] %v829
        %862 = vst [vmem:[#allocation4 + $0x60] sm:$0xf] %v830
        %863 = vst [vmem:[#allocation4 + $0x64] sm:$0xf] %v831
        %864 = vst [vmem:[#allocation4 + $0x68] sm:$0xf] %v832
        %865 = vst [vmem:[#allocation4 + $0x6c] sm:$0xf] %v833
        %866 = vst [vmem:[#allocation4 + $0x70] sm:$0xf] %v834
        %867 = vst [vmem:[#allocation4 + $0x74] sm:$0xf] %v835
        %868 = vst [vmem:[#allocation4 + $0x78] sm:$0xf] %v836
        %869 = vst [vmem:[#allocation4 + $0x7c] sm:$0xf] %v837
        %870 = vst [vmem:[#allocation5] sm:$0xff] 0.0
        %871 = vst [vmem:[#allocation5 + $0x8] sm:$0xff] 0.0
        %872 = vst [vmem:[#allocation5 + $0x10] sm:$0xff] 0.0
        %873 = vst [vmem:[#allocation5 + $0x18] sm:$0xff] 0.0
        %874 = vst [vmem:[#allocation5 + $0x20] sm:$0xff] 0.0
        %875 = vst [vmem:[#allocation5 + $0x28] sm:$0xff] 0.0
        %876 = vst [vmem:[#allocation5 + $0x30] sm:$0xff] 0.0
        %877 = vst [vmem:[#allocation5 + $0x38] sm:$0xff] 0.0
        %878 = vst [vmem:[#allocation5 + $0x40] sm:$0xff] 0.0
        %879 = vst [vmem:[#allocation5 + $0x48] sm:$0xff] 0.0
        %880 = vst [vmem:[#allocation5 + $0x50] sm:$0xff] 0.0
        %881 = vst [vmem:[#allocation5 + $0x58] sm:$0xff] 0.0
        %882 = vst [vmem:[#allocation5 + $0x60] sm:$0xff] 0.0
        %883 = vst [vmem:[#allocation5 + $0x68] sm:$0xff] 0.0
        %884 = vst [vmem:[#allocation5 + $0x70] sm:$0xff] 0.0
        %885 = vst [vmem:[#allocation5 + $0x78] sm:$0xff] 0.0
        %886 = vst [vmem:[#allocation5 + $0x80] sm:$0xff] 0.0
        %887 = vst [vmem:[#allocation5 + $0x88] sm:$0xff] 0.0
        %888 = vst [vmem:[#allocation5 + $0x90] sm:$0xff] 0.0
        %889 = vst [vmem:[#allocation5 + $0x98] sm:$0xff] 0.0
        %890 = vst [vmem:[#allocation5 + $0xa0] sm:$0xff] 0.0
        %891 = vst [vmem:[#allocation5 + $0xa8] sm:$0xff] 0.0
        %892 = vst [vmem:[#allocation5 + $0xb0] sm:$0xff] 0.0
        %893 = vst [vmem:[#allocation5 + $0xb8] sm:$0xff] 0.0
        %894 = vst [vmem:[#allocation5 + $0xc0] sm:$0xff] 0.0
        %895 = vst [vmem:[#allocation5 + $0xc8] sm:$0xff] 0.0
        %896 = vst [vmem:[#allocation5 + $0xd0] sm:$0xff] 0.0
        %897 = vst [vmem:[#allocation5 + $0xd8] sm:$0xff] 0.0
        %898 = vst [vmem:[#allocation5 + $0xe0] sm:$0xff] 0.0
        %899 = vst [vmem:[#allocation5 + $0xe8] sm:$0xff] 0.0
        %900 = vst [vmem:[#allocation5 + $0xf0] sm:$0xff] 0.0
        %901 = vst [vmem:[#allocation5 + $0xf8] sm:$0xff] 0.0
      $region44: #{dirgnn_forward.1} parent=39 // pred_fallthru
        _
      %v902 = vld [vmem:[%s278] sm:$0xff]
      %v903 = vld [vmem:[%s278 + $0x8] sm:$0xff]
      %v904 = vld [vmem:[%s278 + $0x10] sm:$0xff]
      %v905 = vld [vmem:[%s278 + $0x18] sm:$0xff]
      %v906 = vld [vmem:[%s278 + $0x20] sm:$0xff]
      %v907 = vld [vmem:[%s278 + $0x28] sm:$0xff]
      %v908 = vld [vmem:[%s278 + $0x30] sm:$0xff]
      %v909 = vld [vmem:[%s278 + $0x38] sm:$0xff]
      %v910 = vld [vmem:[%s278 + $0x40] sm:$0xff]
      %v911 = vld [vmem:[%s278 + $0x48] sm:$0xff]
      %v912 = vld [vmem:[%s278 + $0x50] sm:$0xff]
      %v913 = vld [vmem:[%s278 + $0x58] sm:$0xff]
      %v914 = vld [vmem:[%s278 + $0x60] sm:$0xff]
      %v915 = vld [vmem:[%s278 + $0x68] sm:$0xff]
      %v916 = vld [vmem:[%s278 + $0x70] sm:$0xff]
      %v917 = vld [vmem:[%s278 + $0x78] sm:$0xff]
      %v918 = vld [vmem:[%s278 + $0x80] sm:$0xff]
      %v919 = vld [vmem:[%s278 + $0x88] sm:$0xff]
      %v920 = vld [vmem:[%s278 + $0x90] sm:$0xff]
      %v921 = vld [vmem:[%s278 + $0x98] sm:$0xff]
      %v922 = vld [vmem:[%s278 + $0xa0] sm:$0xff]
      %v923 = vld [vmem:[%s278 + $0xa8] sm:$0xff]
      %v924 = vld [vmem:[%s278 + $0xb0] sm:$0xff]
      %v925 = vld [vmem:[%s278 + $0xb8] sm:$0xff]
      %v926 = vld [vmem:[%s278 + $0xc0] sm:$0xff]
      %v927 = vld [vmem:[%s278 + $0xc8] sm:$0xff]
      %v928 = vld [vmem:[%s278 + $0xd0] sm:$0xff]
      %v929 = vld [vmem:[%s278 + $0xd8] sm:$0xff]
      %v930 = vld [vmem:[%s278 + $0xe0] sm:$0xff]
      %v931 = vld [vmem:[%s278 + $0xe8] sm:$0xff]
      %v932 = vld [vmem:[%s278 + $0xf0] sm:$0xff]
      %v933 = vld [vmem:[%s278 + $0xf8] sm:$0xff]
      %v934 = vld [vmem:[#allocation3] sm:$0xf]
      %v935 = vld [vmem:[#allocation3 + $0x4] sm:$0xf]
      %v936 = vld [vmem:[#allocation3 + $0x8] sm:$0xf]
      %v937 = vld [vmem:[#allocation3 + $0xc] sm:$0xf]
      %v938 = vld [vmem:[#allocation3 + $0x10] sm:$0xf]
      %v939 = vld [vmem:[#allocation3 + $0x14] sm:$0xf]
      %v940 = vld [vmem:[#allocation3 + $0x18] sm:$0xf]
      %v941 = vld [vmem:[#allocation3 + $0x1c] sm:$0xf]
      %v942 = vld [vmem:[#allocation3 + $0x20] sm:$0xf]
      %v943 = vld [vmem:[#allocation3 + $0x24] sm:$0xf]
      %v944 = vld [vmem:[#allocation3 + $0x28] sm:$0xf]
      %v945 = vld [vmem:[#allocation3 + $0x2c] sm:$0xf]
      %v946 = vld [vmem:[#allocation3 + $0x30] sm:$0xf]
      %v947 = vld [vmem:[#allocation3 + $0x34] sm:$0xf]
      %v948 = vld [vmem:[#allocation3 + $0x38] sm:$0xf]
      %v949 = vld [vmem:[#allocation3 + $0x3c] sm:$0xf]
      %v950 = vld [vmem:[#allocation3 + $0x40] sm:$0xf]
      %v951 = vld [vmem:[#allocation3 + $0x44] sm:$0xf]
      %v952 = vld [vmem:[#allocation3 + $0x48] sm:$0xf]
      %v953 = vld [vmem:[#allocation3 + $0x4c] sm:$0xf]
      %v954 = vld [vmem:[#allocation3 + $0x50] sm:$0xf]
      %v955 = vld [vmem:[#allocation3 + $0x54] sm:$0xf]
      %v956 = vld [vmem:[#allocation3 + $0x58] sm:$0xf]
      %v957 = vld [vmem:[#allocation3 + $0x5c] sm:$0xf]
      %v958 = vld [vmem:[#allocation3 + $0x60] sm:$0xf]
      %v959 = vld [vmem:[#allocation3 + $0x64] sm:$0xf]
      %v960 = vld [vmem:[#allocation3 + $0x68] sm:$0xf]
      %v961 = vld [vmem:[#allocation3 + $0x6c] sm:$0xf]
      %v962 = vld [vmem:[#allocation3 + $0x70] sm:$0xf]
      %v963 = vld [vmem:[#allocation3 + $0x74] sm:$0xf]
      %v964 = vld [vmem:[#allocation3 + $0x78] sm:$0xf]
      %v965 = vld [vmem:[#allocation3 + $0x7c] sm:$0xf]
      %v998 = vunpack.c.l.b16 %v902
      %v999 = vunpack.c.h.b16 %v902
      %v1000 = vunpack.c.l.b16 %v903
      %v1001 = vunpack.c.h.b16 %v903
      %v1002 = vunpack.c.l.b16 %v904
      %v1003 = vunpack.c.h.b16 %v904
      %v1004 = vunpack.c.l.b16 %v905
      %v1005 = vunpack.c.h.b16 %v905
      %v1006 = vunpack.c.l.b16 %v906
      %v1007 = vunpack.c.h.b16 %v906
      %v1008 = vunpack.c.l.b16 %v907
      %v1009 = vunpack.c.h.b16 %v907
      %v1010 = vunpack.c.l.b16 %v908
      %v1011 = vunpack.c.h.b16 %v908
      %v1012 = vunpack.c.l.b16 %v909
      %v1013 = vunpack.c.h.b16 %v909
      %v1014 = vunpack.c.l.b16 %v910
      %v1015 = vunpack.c.h.b16 %v910
      %v1016 = vunpack.c.l.b16 %v911
      %v1017 = vunpack.c.h.b16 %v911
      %v1018 = vunpack.c.l.b16 %v912
      %v1019 = vunpack.c.h.b16 %v912
      %v1020 = vunpack.c.l.b16 %v913
      %v1021 = vunpack.c.h.b16 %v913
      %v1022 = vunpack.c.l.b16 %v914
      %v1023 = vunpack.c.h.b16 %v914
      %v1024 = vunpack.c.l.b16 %v915
      %v1025 = vunpack.c.h.b16 %v915
      %v1026 = vunpack.c.l.b16 %v916
      %v1027 = vunpack.c.h.b16 %v916
      %v1028 = vunpack.c.l.b16 %v917
      %v1029 = vunpack.c.h.b16 %v917
      %v1030 = vunpack.c.l.b16 %v918
      %v1031 = vunpack.c.h.b16 %v918
      %v1032 = vunpack.c.l.b16 %v919
      %v1033 = vunpack.c.h.b16 %v919
      %v1034 = vunpack.c.l.b16 %v920
      %v1035 = vunpack.c.h.b16 %v920
      %v1036 = vunpack.c.l.b16 %v921
      %v1037 = vunpack.c.h.b16 %v921
      %v1038 = vunpack.c.l.b16 %v922
      %v1039 = vunpack.c.h.b16 %v922
      %v1040 = vunpack.c.l.b16 %v923
      %v1041 = vunpack.c.h.b16 %v923
      %v1042 = vunpack.c.l.b16 %v924
      %v1043 = vunpack.c.h.b16 %v924
      %v1044 = vunpack.c.l.b16 %v925
      %v1045 = vunpack.c.h.b16 %v925
      %v1046 = vunpack.c.l.b16 %v926
      %v1047 = vunpack.c.h.b16 %v926
      %v1048 = vunpack.c.l.b16 %v927
      %v1049 = vunpack.c.h.b16 %v927
      %v1050 = vunpack.c.l.b16 %v928
      %v1051 = vunpack.c.h.b16 %v928
      %v1052 = vunpack.c.l.b16 %v929
      %v1053 = vunpack.c.h.b16 %v929
      %v1054 = vunpack.c.l.b16 %v930
      %v1055 = vunpack.c.h.b16 %v930
      %v1056 = vunpack.c.l.b16 %v931
      %v1057 = vunpack.c.h.b16 %v931
      %v1058 = vunpack.c.l.b16 %v932
      %v1059 = vunpack.c.h.b16 %v932
      %v1060 = vunpack.c.l.b16 %v933
      %v1061 = vunpack.c.h.b16 %v933
      %v1062 = vpack.c.b16 %v1000, %v998
      %v1063 = vpack.c.b16 %v1001, %v999
      %v1064 = vpack.c.b16 %v1004, %v1002
      %v1065 = vpack.c.b16 %v1005, %v1003
      %v1066 = vpack.c.b16 %v1008, %v1006
      %v1067 = vpack.c.b16 %v1009, %v1007
      %v1068 = vpack.c.b16 %v1012, %v1010
      %v1069 = vpack.c.b16 %v1013, %v1011
      %v1070 = vpack.c.b16 %v1016, %v1014
      %v1071 = vpack.c.b16 %v1017, %v1015
      %v1072 = vpack.c.b16 %v1020, %v1018
      %v1073 = vpack.c.b16 %v1021, %v1019
      %v1074 = vpack.c.b16 %v1024, %v1022
      %v1075 = vpack.c.b16 %v1025, %v1023
      %v1076 = vpack.c.b16 %v1028, %v1026
      %v1077 = vpack.c.b16 %v1029, %v1027
      %v1078 = vpack.c.b16 %v1032, %v1030
      %v1079 = vpack.c.b16 %v1033, %v1031
      %v1080 = vpack.c.b16 %v1036, %v1034
      %v1081 = vpack.c.b16 %v1037, %v1035
      %v1082 = vpack.c.b16 %v1040, %v1038
      %v1083 = vpack.c.b16 %v1041, %v1039
      %v1084 = vpack.c.b16 %v1044, %v1042
      %v1085 = vpack.c.b16 %v1045, %v1043
      %v1086 = vpack.c.b16 %v1048, %v1046
      %v1087 = vpack.c.b16 %v1049, %v1047
      %v1088 = vpack.c.b16 %v1052, %v1050
      %v1089 = vpack.c.b16 %v1053, %v1051
      %v1090 = vpack.c.b16 %v1056, %v1054
      %v1091 = vpack.c.b16 %v1057, %v1055
      %v1092 = vpack.c.b16 %v1060, %v1058
      %v1093 = vpack.c.b16 %v1061, %v1059
      %v1158 = vunpack.c.l.b16 %v934
      %v1159 = vunpack.c.l.b16 %v935
      %v1160 = vunpack.c.l.b16 %v936
      %v1161 = vunpack.c.l.b16 %v937
      %v1162 = vunpack.c.l.b16 %v938
      %v1163 = vunpack.c.l.b16 %v939
      %v1164 = vunpack.c.l.b16 %v940
      %v1165 = vunpack.c.l.b16 %v941
      %v1166 = vunpack.c.l.b16 %v942
      %v1167 = vunpack.c.l.b16 %v943
      %v1168 = vunpack.c.l.b16 %v944
      %v1169 = vunpack.c.l.b16 %v945
      %v1170 = vunpack.c.l.b16 %v946
      %v1171 = vunpack.c.l.b16 %v947
      %v1172 = vunpack.c.l.b16 %v948
      %v1173 = vunpack.c.l.b16 %v949
      %v1174 = vunpack.c.l.b16 %v950
      %v1175 = vunpack.c.l.b16 %v951
      %v1176 = vunpack.c.l.b16 %v952
      %v1177 = vunpack.c.l.b16 %v953
      %v1178 = vunpack.c.l.b16 %v954
      %v1179 = vunpack.c.l.b16 %v955
      %v1180 = vunpack.c.l.b16 %v956
      %v1181 = vunpack.c.l.b16 %v957
      %v1182 = vunpack.c.l.b16 %v958
      %v1183 = vunpack.c.l.b16 %v959
      %v1184 = vunpack.c.l.b16 %v960
      %v1185 = vunpack.c.l.b16 %v961
      %v1186 = vunpack.c.l.b16 %v962
      %v1187 = vunpack.c.l.b16 %v963
      %v1188 = vunpack.c.l.b16 %v964
      %v1189 = vunpack.c.l.b16 %v965
      %v1190 = vpack.c.b16 %v1159, %v1158
      %v1191 = vpack.c.b16 %v1161, %v1160
      %v1192 = vpack.c.b16 %v1163, %v1162
      %v1193 = vpack.c.b16 %v1165, %v1164
      %v1194 = vpack.c.b16 %v1167, %v1166
      %v1195 = vpack.c.b16 %v1169, %v1168
      %v1196 = vpack.c.b16 %v1171, %v1170
      %v1197 = vpack.c.b16 %v1173, %v1172
      %v1198 = vpack.c.b16 %v1175, %v1174
      %v1199 = vpack.c.b16 %v1177, %v1176
      %v1200 = vpack.c.b16 %v1179, %v1178
      %v1201 = vpack.c.b16 %v1181, %v1180
      %v1202 = vpack.c.b16 %v1183, %v1182
      %v1203 = vpack.c.b16 %v1185, %v1184
      %v1204 = vpack.c.b16 %v1187, %v1186
      %v1205 = vpack.c.b16 %v1189, %v1188
      %1222 = vmatpush.bf16.msra.mxu0 %v1197
      %1223 = vmatpush.bf16.msra.mxu0 %v1196
      %1224 = vmatpush.bf16.msra.mxu0 %v1195
      %1225 = vmatpush.bf16.msra.mxu0 %v1194
      %1226 = vmatpush.bf16.msra.mxu0 %v1193
      %1227 = vmatpush.bf16.msra.mxu0 %v1192
      %1228 = vmatpush.bf16.msra.mxu0 %v1191
      %1229 = vmatpush.bf16.msra.mxu0 %v1190
      %1230 = vmatmul.bf16.gmra.mxu0 %v1062
      %v1231 = vpop.f32.mrf.mxu0
      %v1232 = vadd.f32 0.0, %v1231
      %v1233 = vpop.f32.mrf.mxu0
      %v1234 = vadd.f32 0.0, %v1233
      %1235 = vmatmul.bf16.gmra.mxu0 %v1064
      %v1236 = vpop.f32.mrf.mxu0
      %v1237 = vadd.f32 0.0, %v1236
      %v1238 = vpop.f32.mrf.mxu0
      %v1239 = vadd.f32 0.0, %v1238
      %1240 = vmatmul.bf16.gmra.mxu0 %v1066
      %v1241 = vpop.f32.mrf.mxu0
      %v1242 = vadd.f32 0.0, %v1241
      %v1243 = vpop.f32.mrf.mxu0
      %v1244 = vadd.f32 0.0, %v1243
      %1245 = vmatmul.bf16.gmra.mxu0 %v1068
      %v1246 = vpop.f32.mrf.mxu0
      %v1247 = vadd.f32 0.0, %v1246
      %v1248 = vpop.f32.mrf.mxu0
      %v1249 = vadd.f32 0.0, %v1248
      %1250 = vmatmul.bf16.gmra.mxu0 %v1070
      %v1251 = vpop.f32.mrf.mxu0
      %v1252 = vadd.f32 0.0, %v1251
      %v1253 = vpop.f32.mrf.mxu0
      %v1254 = vadd.f32 0.0, %v1253
      %1255 = vmatmul.bf16.gmra.mxu0 %v1072
      %v1256 = vpop.f32.mrf.mxu0
      %v1257 = vadd.f32 0.0, %v1256
      %v1258 = vpop.f32.mrf.mxu0
      %v1259 = vadd.f32 0.0, %v1258
      %1260 = vmatmul.bf16.gmra.mxu0 %v1074
      %v1261 = vpop.f32.mrf.mxu0
      %v1262 = vadd.f32 0.0, %v1261
      %v1263 = vpop.f32.mrf.mxu0
      %v1264 = vadd.f32 0.0, %v1263
      %1265 = vmatmul.bf16.gmra.mxu0 %v1076
      %v1266 = vpop.f32.mrf.mxu0
      %v1267 = vadd.f32 0.0, %v1266
      %v1268 = vpop.f32.mrf.mxu0
      %v1269 = vadd.f32 0.0, %v1268
      %1270 = vmatmul.bf16.gmra.mxu0 %v1078
      %v1271 = vpop.f32.mrf.mxu0
      %v1272 = vadd.f32 0.0, %v1271
      %v1273 = vpop.f32.mrf.mxu0
      %v1274 = vadd.f32 0.0, %v1273
      %1275 = vmatmul.bf16.gmra.mxu0 %v1080
      %v1276 = vpop.f32.mrf.mxu0
      %v1277 = vadd.f32 0.0, %v1276
      %v1278 = vpop.f32.mrf.mxu0
      %v1279 = vadd.f32 0.0, %v1278
      %1280 = vmatmul.bf16.gmra.mxu0 %v1082
      %v1281 = vpop.f32.mrf.mxu0
      %v1282 = vadd.f32 0.0, %v1281
      %v1283 = vpop.f32.mrf.mxu0
      %v1284 = vadd.f32 0.0, %v1283
      %1285 = vmatmul.bf16.gmra.mxu0 %v1084
      %v1286 = vpop.f32.mrf.mxu0
      %v1287 = vadd.f32 0.0, %v1286
      %v1288 = vpop.f32.mrf.mxu0
      %v1289 = vadd.f32 0.0, %v1288
      %1290 = vmatmul.bf16.gmra.mxu0 %v1086
      %v1291 = vpop.f32.mrf.mxu0
      %v1292 = vadd.f32 0.0, %v1291
      %v1293 = vpop.f32.mrf.mxu0
      %v1294 = vadd.f32 0.0, %v1293
      %1295 = vmatmul.bf16.gmra.mxu0 %v1088
      %v1296 = vpop.f32.mrf.mxu0
      %v1297 = vadd.f32 0.0, %v1296
      %v1298 = vpop.f32.mrf.mxu0
      %v1299 = vadd.f32 0.0, %v1298
      %1300 = vmatmul.bf16.gmra.mxu0 %v1090
      %v1301 = vpop.f32.mrf.mxu0
      %v1302 = vadd.f32 0.0, %v1301
      %v1303 = vpop.f32.mrf.mxu0
      %v1304 = vadd.f32 0.0, %v1303
      %1305 = vmatmul.bf16.gmra.mxu0 %v1092
      %v1306 = vpop.f32.mrf.mxu0
      %v1307 = vadd.f32 0.0, %v1306
      %v1308 = vpop.f32.mrf.mxu0
      %v1309 = vadd.f32 0.0, %v1308
      %1310 = vdwg.mxu0
      %1311 = vmatpush.bf16.msra.mxu0 %v1205
      %1312 = vmatpush.bf16.msra.mxu0 %v1204
      %1313 = vmatpush.bf16.msra.mxu0 %v1203
      %1314 = vmatpush.bf16.msra.mxu0 %v1202
      %1315 = vmatpush.bf16.msra.mxu0 %v1201
      %1316 = vmatpush.bf16.msra.mxu0 %v1200
      %1317 = vmatpush.bf16.msra.mxu0 %v1199
      %1318 = vmatpush.bf16.msra.mxu0 %v1198
      %1319 = vmatmul.bf16.gmra.mxu0 %v1063
      %v1320 = vpop.f32.mrf.mxu0
      %v1321 = vadd.f32 %v1232, %v1320
      %v1322 = vpop.f32.mrf.mxu0
      %v1323 = vadd.f32 %v1234, %v1322
      %1324 = vmatmul.bf16.gmra.mxu0 %v1065
      %v1325 = vpop.f32.mrf.mxu0
      %v1326 = vadd.f32 %v1237, %v1325
      %v1327 = vpop.f32.mrf.mxu0
      %v1328 = vadd.f32 %v1239, %v1327
      %1329 = vmatmul.bf16.gmra.mxu0 %v1067
      %v1330 = vpop.f32.mrf.mxu0
      %v1331 = vadd.f32 %v1242, %v1330
      %v1332 = vpop.f32.mrf.mxu0
      %v1333 = vadd.f32 %v1244, %v1332
      %1334 = vmatmul.bf16.gmra.mxu0 %v1069
      %v1335 = vpop.f32.mrf.mxu0
      %v1336 = vadd.f32 %v1247, %v1335
      %v1337 = vpop.f32.mrf.mxu0
      %v1338 = vadd.f32 %v1249, %v1337
      %1339 = vmatmul.bf16.gmra.mxu0 %v1071
      %v1340 = vpop.f32.mrf.mxu0
      %v1341 = vadd.f32 %v1252, %v1340
      %v1342 = vpop.f32.mrf.mxu0
      %v1343 = vadd.f32 %v1254, %v1342
      %1344 = vmatmul.bf16.gmra.mxu0 %v1073
      %v1345 = vpop.f32.mrf.mxu0
      %v1346 = vadd.f32 %v1257, %v1345
      %v1347 = vpop.f32.mrf.mxu0
      %v1348 = vadd.f32 %v1259, %v1347
      %1349 = vmatmul.bf16.gmra.mxu0 %v1075
      %v1350 = vpop.f32.mrf.mxu0
      %v1351 = vadd.f32 %v1262, %v1350
      %v1352 = vpop.f32.mrf.mxu0
      %v1353 = vadd.f32 %v1264, %v1352
      %1354 = vmatmul.bf16.gmra.mxu0 %v1077
      %v1355 = vpop.f32.mrf.mxu0
      %v1356 = vadd.f32 %v1267, %v1355
      %v1357 = vpop.f32.mrf.mxu0
      %v1358 = vadd.f32 %v1269, %v1357
      %1359 = vmatmul.bf16.gmra.mxu0 %v1079
      %v1360 = vpop.f32.mrf.mxu0
      %v1361 = vadd.f32 %v1272, %v1360
      %v1362 = vpop.f32.mrf.mxu0
      %v1363 = vadd.f32 %v1274, %v1362
      %1364 = vmatmul.bf16.gmra.mxu0 %v1081
      %v1365 = vpop.f32.mrf.mxu0
      %v1366 = vadd.f32 %v1277, %v1365
      %v1367 = vpop.f32.mrf.mxu0
      %v1368 = vadd.f32 %v1279, %v1367
      %1369 = vmatmul.bf16.gmra.mxu0 %v1083
      %v1370 = vpop.f32.mrf.mxu0
      %v1371 = vadd.f32 %v1282, %v1370
      %v1372 = vpop.f32.mrf.mxu0
      %v1373 = vadd.f32 %v1284, %v1372
      %1374 = vmatmul.bf16.gmra.mxu0 %v1085
      %v1375 = vpop.f32.mrf.mxu0
      %v1376 = vadd.f32 %v1287, %v1375
      %v1377 = vpop.f32.mrf.mxu0
      %v1378 = vadd.f32 %v1289, %v1377
      %1379 = vmatmul.bf16.gmra.mxu0 %v1087
      %v1380 = vpop.f32.mrf.mxu0
      %v1381 = vadd.f32 %v1292, %v1380
      %v1382 = vpop.f32.mrf.mxu0
      %v1383 = vadd.f32 %v1294, %v1382
      %1384 = vmatmul.bf16.gmra.mxu0 %v1089
      %v1385 = vpop.f32.mrf.mxu0
      %v1386 = vadd.f32 %v1297, %v1385
      %v1387 = vpop.f32.mrf.mxu0
      %v1388 = vadd.f32 %v1299, %v1387
      %1389 = vmatmul.bf16.gmra.mxu0 %v1091
      %v1390 = vpop.f32.mrf.mxu0
      %v1391 = vadd.f32 %v1302, %v1390
      %v1392 = vpop.f32.mrf.mxu0
      %v1393 = vadd.f32 %v1304, %v1392
      %1394 = vmatmul.bf16.gmra.mxu0 %v1093
      %v1395 = vpop.f32.mrf.mxu0
      %v1396 = vadd.f32 %v1307, %v1395
      %v1397 = vpop.f32.mrf.mxu0
      %v1398 = vadd.f32 %v1309, %v1397
      %1399 = vdwg.mxu0
      %s1400 = scalar_lea.vmem [#allocation2], %s296
      %1401 = vst [vmem:[%s1400] sm:$0xff] %v1321
      %1402 = vst [vmem:[%s1400 + $0x8] sm:$0xff] %v1323
      %1403 = vst [vmem:[%s1400 + $0x10] sm:$0xff] %v1326
      %1404 = vst [vmem:[%s1400 + $0x18] sm:$0xff] %v1328
      %1405 = vst [vmem:[%s1400 + $0x20] sm:$0xff] %v1331
      %1406 = vst [vmem:[%s1400 + $0x28] sm:$0xff] %v1333
      %1407 = vst [vmem:[%s1400 + $0x30] sm:$0xff] %v1336
      %1408 = vst [vmem:[%s1400 + $0x38] sm:$0xff] %v1338
      %1409 = vst [vmem:[%s1400 + $0x40] sm:$0xff] %v1341
      %1410 = vst [vmem:[%s1400 + $0x48] sm:$0xff] %v1343
      %1411 = vst [vmem:[%s1400 + $0x50] sm:$0xff] %v1346
      %1412 = vst [vmem:[%s1400 + $0x58] sm:$0xff] %v1348
      %1413 = vst [vmem:[%s1400 + $0x60] sm:$0xff] %v1351
      %1414 = vst [vmem:[%s1400 + $0x68] sm:$0xff] %v1353
      %1415 = vst [vmem:[%s1400 + $0x70] sm:$0xff] %v1356
      %1416 = vst [vmem:[%s1400 + $0x78] sm:$0xff] %v1358
      %1417 = vst [vmem:[%s1400 + $0x80] sm:$0xff] %v1361
      %1418 = vst [vmem:[%s1400 + $0x88] sm:$0xff] %v1363
      %1419 = vst [vmem:[%s1400 + $0x90] sm:$0xff] %v1366
      %1420 = vst [vmem:[%s1400 + $0x98] sm:$0xff] %v1368
      %1421 = vst [vmem:[%s1400 + $0xa0] sm:$0xff] %v1371
      %1422 = vst [vmem:[%s1400 + $0xa8] sm:$0xff] %v1373
      %1423 = vst [vmem:[%s1400 + $0xb0] sm:$0xff] %v1376
      %1424 = vst [vmem:[%s1400 + $0xb8] sm:$0xff] %v1378
      %1425 = vst [vmem:[%s1400 + $0xc0] sm:$0xff] %v1381
      %1426 = vst [vmem:[%s1400 + $0xc8] sm:$0xff] %v1383
      %1427 = vst [vmem:[%s1400 + $0xd0] sm:$0xff] %v1386
      %1428 = vst [vmem:[%s1400 + $0xd8] sm:$0xff] %v1388
      %1429 = vst [vmem:[%s1400 + $0xe0] sm:$0xff] %v1391
      %1430 = vst [vmem:[%s1400 + $0xe8] sm:$0xff] %v1393
      %1431 = vst [vmem:[%s1400 + $0xf0] sm:$0xff] %v1396
      %1432 = vst [vmem:[%s1400 + $0xf8] sm:$0xff] %v1398
      %v1433 = vld [vmem:[#allocation5] sm:$0xff]
      %v1434 = vld [vmem:[#allocation5 + $0x8] sm:$0xff]
      %v1435 = vld [vmem:[#allocation5 + $0x10] sm:$0xff]
      %v1436 = vld [vmem:[#allocation5 + $0x18] sm:$0xff]
      %v1437 = vld [vmem:[#allocation5 + $0x20] sm:$0xff]
      %v1438 = vld [vmem:[#allocation5 + $0x28] sm:$0xff]
      %v1439 = vld [vmem:[#allocation5 + $0x30] sm:$0xff]
      %v1440 = vld [vmem:[#allocation5 + $0x38] sm:$0xff]
      %v1441 = vld [vmem:[#allocation5 + $0x40] sm:$0xff]
      %v1442 = vld [vmem:[#allocation5 + $0x48] sm:$0xff]
      %v1443 = vld [vmem:[#allocation5 + $0x50] sm:$0xff]
      %v1444 = vld [vmem:[#allocation5 + $0x58] sm:$0xff]
      %v1445 = vld [vmem:[#allocation5 + $0x60] sm:$0xff]
      %v1446 = vld [vmem:[#allocation5 + $0x68] sm:$0xff]
      %v1447 = vld [vmem:[#allocation5 + $0x70] sm:$0xff]
      %v1448 = vld [vmem:[#allocation5 + $0x78] sm:$0xff]
      %v1449 = vld [vmem:[#allocation5 + $0x80] sm:$0xff]
      %v1450 = vld [vmem:[#allocation5 + $0x88] sm:$0xff]
      %v1451 = vld [vmem:[#allocation5 + $0x90] sm:$0xff]
      %v1452 = vld [vmem:[#allocation5 + $0x98] sm:$0xff]
      %v1453 = vld [vmem:[#allocation5 + $0xa0] sm:$0xff]
      %v1454 = vld [vmem:[#allocation5 + $0xa8] sm:$0xff]
      %v1455 = vld [vmem:[#allocation5 + $0xb0] sm:$0xff]
      %v1456 = vld [vmem:[#allocation5 + $0xb8] sm:$0xff]
      %v1457 = vld [vmem:[#allocation5 + $0xc0] sm:$0xff]
      %v1458 = vld [vmem:[#allocation5 + $0xc8] sm:$0xff]
      %v1459 = vld [vmem:[#allocation5 + $0xd0] sm:$0xff]
      %v1460 = vld [vmem:[#allocation5 + $0xd8] sm:$0xff]
      %v1461 = vld [vmem:[#allocation5 + $0xe0] sm:$0xff]
      %v1462 = vld [vmem:[#allocation5 + $0xe8] sm:$0xff]
      %v1463 = vld [vmem:[#allocation5 + $0xf0] sm:$0xff]
      %v1464 = vld [vmem:[#allocation5 + $0xf8] sm:$0xff]
      %s1465 = sshra.s32 %s296, 3
      %s1466 = sand.u32 %s296, 7
      %s1467 = smul.addr %s1465, 4
      %s1468 = scalar_lea.vmem [#allocation4], %s1467
      %v1469 = vld [vmem:[%s1468] sm:$0xf]
      %v1470 = vld [vmem:[%s1468 + $0x4] sm:$0xf]
      %v1471 = vld [vmem:[%s1468 + $0x8] sm:$0xf]
      %v1472 = vld [vmem:[%s1468 + $0xc] sm:$0xf]
      %v1473 = vld [vmem:[%s1468 + $0x10] sm:$0xf]
      %v1474 = vld [vmem:[%s1468 + $0x14] sm:$0xf]
      %v1475 = vld [vmem:[%s1468 + $0x18] sm:$0xf]
      %v1476 = vld [vmem:[%s1468 + $0x1c] sm:$0xf]
      %v1477 = vld [vmem:[%s1468 + $0x20] sm:$0xf]
      %v1478 = vld [vmem:[%s1468 + $0x24] sm:$0xf]
      %v1479 = vld [vmem:[%s1468 + $0x28] sm:$0xf]
      %v1480 = vld [vmem:[%s1468 + $0x2c] sm:$0xf]
      %v1481 = vld [vmem:[%s1468 + $0x30] sm:$0xf]
      %v1482 = vld [vmem:[%s1468 + $0x34] sm:$0xf]
      %v1483 = vld [vmem:[%s1468 + $0x38] sm:$0xf]
      %v1484 = vld [vmem:[%s1468 + $0x3c] sm:$0xf]
      %v1485 = vld [vmem:[%s1468 + $0x40] sm:$0xf]
      %v1486 = vld [vmem:[%s1468 + $0x44] sm:$0xf]
      %v1487 = vld [vmem:[%s1468 + $0x48] sm:$0xf]
      %v1488 = vld [vmem:[%s1468 + $0x4c] sm:$0xf]
      %v1489 = vld [vmem:[%s1468 + $0x50] sm:$0xf]
      %v1490 = vld [vmem:[%s1468 + $0x54] sm:$0xf]
      %v1491 = vld [vmem:[%s1468 + $0x58] sm:$0xf]
      %v1492 = vld [vmem:[%s1468 + $0x5c] sm:$0xf]
      %v1493 = vld [vmem:[%s1468 + $0x60] sm:$0xf]
      %v1494 = vld [vmem:[%s1468 + $0x64] sm:$0xf]
      %v1495 = vld [vmem:[%s1468 + $0x68] sm:$0xf]
      %v1496 = vld [vmem:[%s1468 + $0x6c] sm:$0xf]
      %v1497 = vld [vmem:[%s1468 + $0x70] sm:$0xf]
      %v1498 = vld [vmem:[%s1468 + $0x74] sm:$0xf]
      %v1499 = vld [vmem:[%s1468 + $0x78] sm:$0xf]
      %v1500 = vld [vmem:[%s1468 + $0x7c] sm:$0xf]
      %1501 = vxpose.binary.xlu0.c.b16.start [1/16] %v1063, %v1062, 128
      %1502 = vxpose.binary.xlu0.c.b16.cont [2/16] %v1065, %v1064, 128
      %1503 = vxpose.binary.xlu0.c.b16.cont [3/16] %v1067, %v1066, 128
      %1504 = vxpose.binary.xlu0.c.b16.cont [4/16] %v1069, %v1068, 128
      %1505 = vxpose.binary.xlu0.c.b16.cont [5/16] %v1071, %v1070, 128
      %1506 = vxpose.binary.xlu0.c.b16.cont [6/16] %v1073, %v1072, 128
      %1507 = vxpose.binary.xlu0.c.b16.cont [7/16] %v1075, %v1074, 128
      %1508 = vxpose.binary.xlu0.c.b16.end [8/16] %v1077, %v1076, 128
      %v1509 = vpop.trf.xlu0
      %v1510 = vpop.trf.xlu0
      %v1511 = vpop.trf.xlu0
      %v1512 = vpop.trf.xlu0
      %v1513 = vpop.trf.xlu0
      %v1514 = vpop.trf.xlu0
      %v1515 = vpop.trf.xlu0
      %v1516 = vpop.trf.xlu0
      %v1517 = vpop.trf.xlu0
      %v1518 = vpop.trf.xlu0
      %v1519 = vpop.trf.xlu0
      %v1520 = vpop.trf.xlu0
      %v1521 = vpop.trf.xlu0
      %v1522 = vpop.trf.xlu0
      %v1523 = vpop.trf.xlu0
      %v1524 = vpop.trf.xlu0
      %1525 = vxpose.binary.xlu0.c.b16.start [1/16] %v1079, %v1078, 128
      %1526 = vxpose.binary.xlu0.c.b16.cont [2/16] %v1081, %v1080, 128
      %1527 = vxpose.binary.xlu0.c.b16.cont [3/16] %v1083, %v1082, 128
      %1528 = vxpose.binary.xlu0.c.b16.cont [4/16] %v1085, %v1084, 128
      %1529 = vxpose.binary.xlu0.c.b16.cont [5/16] %v1087, %v1086, 128
      %1530 = vxpose.binary.xlu0.c.b16.cont [6/16] %v1089, %v1088, 128
      %1531 = vxpose.binary.xlu0.c.b16.cont [7/16] %v1091, %v1090, 128
      %1532 = vxpose.binary.xlu0.c.b16.end [8/16] %v1093, %v1092, 128
      %v1533 = vpop.trf.xlu0
      %v1534 = vpop.trf.xlu0
      %v1535 = vpop.trf.xlu0
      %v1536 = vpop.trf.xlu0
      %v1537 = vpop.trf.xlu0
      %v1538 = vpop.trf.xlu0
      %v1539 = vpop.trf.xlu0
      %v1540 = vpop.trf.xlu0
      %v1541 = vpop.trf.xlu0
      %v1542 = vpop.trf.xlu0
      %v1543 = vpop.trf.xlu0
      %v1544 = vpop.trf.xlu0
      %v1545 = vpop.trf.xlu0
      %v1546 = vpop.trf.xlu0
      %v1547 = vpop.trf.xlu0
      %v1548 = vpop.trf.xlu0
      %v1581 = vunpack.c.l.b16 %v1469
      %v1582 = vunpack.c.l.b16 %v1470
      %v1583 = vunpack.c.l.b16 %v1471
      %v1584 = vunpack.c.l.b16 %v1472
      %v1585 = vunpack.c.l.b16 %v1473
      %v1586 = vunpack.c.l.b16 %v1474
      %v1587 = vunpack.c.l.b16 %v1475
      %v1588 = vunpack.c.l.b16 %v1476
      %v1589 = vunpack.c.l.b16 %v1477
      %v1590 = vunpack.c.l.b16 %v1478
      %v1591 = vunpack.c.l.b16 %v1479
      %v1592 = vunpack.c.l.b16 %v1480
      %v1593 = vunpack.c.l.b16 %v1481
      %v1594 = vunpack.c.l.b16 %v1482
      %v1595 = vunpack.c.l.b16 %v1483
      %v1596 = vunpack.c.l.b16 %v1484
      %v1597 = vunpack.c.l.b16 %v1485
      %v1598 = vunpack.c.l.b16 %v1486
      %v1599 = vunpack.c.l.b16 %v1487
      %v1600 = vunpack.c.l.b16 %v1488
      %v1601 = vunpack.c.l.b16 %v1489
      %v1602 = vunpack.c.l.b16 %v1490
      %v1603 = vunpack.c.l.b16 %v1491
      %v1604 = vunpack.c.l.b16 %v1492
      %v1605 = vunpack.c.l.b16 %v1493
      %v1606 = vunpack.c.l.b16 %v1494
      %v1607 = vunpack.c.l.b16 %v1495
      %v1608 = vunpack.c.l.b16 %v1496
      %v1609 = vunpack.c.l.b16 %v1497
      %v1610 = vunpack.c.l.b16 %v1498
      %v1611 = vunpack.c.l.b16 %v1499
      %v1612 = vunpack.c.l.b16 %v1500
      %v1613 = vpack.c.b16 %v1582, %v1581
      %v1614 = vpack.c.b16 %v1584, %v1583
      %v1615 = vpack.c.b16 %v1586, %v1585
      %v1616 = vpack.c.b16 %v1588, %v1587
      %v1617 = vpack.c.b16 %v1590, %v1589
      %v1618 = vpack.c.b16 %v1592, %v1591
      %v1619 = vpack.c.b16 %v1594, %v1593
      %v1620 = vpack.c.b16 %v1596, %v1595
      %v1621 = vpack.c.b16 %v1598, %v1597
      %v1622 = vpack.c.b16 %v1600, %v1599
      %v1623 = vpack.c.b16 %v1602, %v1601
      %v1624 = vpack.c.b16 %v1604, %v1603
      %v1625 = vpack.c.b16 %v1606, %v1605
      %v1626 = vpack.c.b16 %v1608, %v1607
      %v1627 = vpack.c.b16 %v1610, %v1609
      %v1628 = vpack.c.b16 %v1612, %v1611
      %1645 = vmatpush.bf16.msra.mxu0 %v1620
      %1646 = vmatpush.bf16.msra.mxu0 %v1619
      %1647 = vmatpush.bf16.msra.mxu0 %v1618
      %1648 = vmatpush.bf16.msra.mxu0 %v1617
      %1649 = vmatpush.bf16.msra.mxu0 %v1616
      %1650 = vmatpush.bf16.msra.mxu0 %v1615
      %1651 = vmatpush.bf16.msra.mxu0 %v1614
      %1652 = vmatpush.bf16.msra.mxu0 %v1613
      %1653 = vmatmul.bf16.gmra.mxu0 %v1509
      %v1654 = vpop.f32.mrf.mxu0
      %v1655 = vadd.f32 0.0, %v1654
      %v1656 = vpop.f32.mrf.mxu0
      %v1657 = vadd.f32 0.0, %v1656
      %1658 = vmatmul.bf16.gmra.mxu0 %v1511
      %v1659 = vpop.f32.mrf.mxu0
      %v1660 = vadd.f32 0.0, %v1659
      %v1661 = vpop.f32.mrf.mxu0
      %v1662 = vadd.f32 0.0, %v1661
      %1663 = vmatmul.bf16.gmra.mxu0 %v1513
      %v1664 = vpop.f32.mrf.mxu0
      %v1665 = vadd.f32 0.0, %v1664
      %v1666 = vpop.f32.mrf.mxu0
      %v1667 = vadd.f32 0.0, %v1666
      %1668 = vmatmul.bf16.gmra.mxu0 %v1515
      %v1669 = vpop.f32.mrf.mxu0
      %v1670 = vadd.f32 0.0, %v1669
      %v1671 = vpop.f32.mrf.mxu0
      %v1672 = vadd.f32 0.0, %v1671
      %1673 = vmatmul.bf16.gmra.mxu0 %v1517
      %v1674 = vpop.f32.mrf.mxu0
      %v1675 = vadd.f32 0.0, %v1674
      %v1676 = vpop.f32.mrf.mxu0
      %v1677 = vadd.f32 0.0, %v1676
      %1678 = vmatmul.bf16.gmra.mxu0 %v1519
      %v1679 = vpop.f32.mrf.mxu0
      %v1680 = vadd.f32 0.0, %v1679
      %v1681 = vpop.f32.mrf.mxu0
      %v1682 = vadd.f32 0.0, %v1681
      %1683 = vmatmul.bf16.gmra.mxu0 %v1521
      %v1684 = vpop.f32.mrf.mxu0
      %v1685 = vadd.f32 0.0, %v1684
      %v1686 = vpop.f32.mrf.mxu0
      %v1687 = vadd.f32 0.0, %v1686
      %1688 = vmatmul.bf16.gmra.mxu0 %v1523
      %v1689 = vpop.f32.mrf.mxu0
      %v1690 = vadd.f32 0.0, %v1689
      %v1691 = vpop.f32.mrf.mxu0
      %v1692 = vadd.f32 0.0, %v1691
      %1693 = vmatmul.bf16.gmra.mxu0 %v1510
      %v1694 = vpop.f32.mrf.mxu0
      %v1695 = vadd.f32 0.0, %v1694
      %v1696 = vpop.f32.mrf.mxu0
      %v1697 = vadd.f32 0.0, %v1696
      %1698 = vmatmul.bf16.gmra.mxu0 %v1512
      %v1699 = vpop.f32.mrf.mxu0
      %v1700 = vadd.f32 0.0, %v1699
      %v1701 = vpop.f32.mrf.mxu0
      %v1702 = vadd.f32 0.0, %v1701
      %1703 = vmatmul.bf16.gmra.mxu0 %v1514
      %v1704 = vpop.f32.mrf.mxu0
      %v1705 = vadd.f32 0.0, %v1704
      %v1706 = vpop.f32.mrf.mxu0
      %v1707 = vadd.f32 0.0, %v1706
      %1708 = vmatmul.bf16.gmra.mxu0 %v1516
      %v1709 = vpop.f32.mrf.mxu0
      %v1710 = vadd.f32 0.0, %v1709
      %v1711 = vpop.f32.mrf.mxu0
      %v1712 = vadd.f32 0.0, %v1711
      %1713 = vmatmul.bf16.gmra.mxu0 %v1518
      %v1714 = vpop.f32.mrf.mxu0
      %v1715 = vadd.f32 0.0, %v1714
      %v1716 = vpop.f32.mrf.mxu0
      %v1717 = vadd.f32 0.0, %v1716
      %1718 = vmatmul.bf16.gmra.mxu0 %v1520
      %v1719 = vpop.f32.mrf.mxu0
      %v1720 = vadd.f32 0.0, %v1719
      %v1721 = vpop.f32.mrf.mxu0
      %v1722 = vadd.f32 0.0, %v1721
      %1723 = vmatmul.bf16.gmra.mxu0 %v1522
      %v1724 = vpop.f32.mrf.mxu0
      %v1725 = vadd.f32 0.0, %v1724
      %v1726 = vpop.f32.mrf.mxu0
      %v1727 = vadd.f32 0.0, %v1726
      %1728 = vmatmul.bf16.gmra.mxu0 %v1524
      %v1729 = vpop.f32.mrf.mxu0
      %v1730 = vadd.f32 0.0, %v1729
      %v1731 = vpop.f32.mrf.mxu0
      %v1732 = vadd.f32 0.0, %v1731
      %1733 = vdwg.mxu0
      %1734 = vmatpush.bf16.msra.mxu0 %v1628
      %1735 = vmatpush.bf16.msra.mxu0 %v1627
      %1736 = vmatpush.bf16.msra.mxu0 %v1626
      %1737 = vmatpush.bf16.msra.mxu0 %v1625
      %1738 = vmatpush.bf16.msra.mxu0 %v1624
      %1739 = vmatpush.bf16.msra.mxu0 %v1623
      %1740 = vmatpush.bf16.msra.mxu0 %v1622
      %1741 = vmatpush.bf16.msra.mxu0 %v1621
      %1742 = vmatmul.bf16.gmra.mxu0 %v1533
      %v1743 = vpop.f32.mrf.mxu0
      %v1744 = vadd.f32 %v1655, %v1743
      %v1745 = vpop.f32.mrf.mxu0
      %v1746 = vadd.f32 %v1657, %v1745
      %1747 = vmatmul.bf16.gmra.mxu0 %v1535
      %v1748 = vpop.f32.mrf.mxu0
      %v1749 = vadd.f32 %v1660, %v1748
      %v1750 = vpop.f32.mrf.mxu0
      %v1751 = vadd.f32 %v1662, %v1750
      %1752 = vmatmul.bf16.gmra.mxu0 %v1537
      %v1753 = vpop.f32.mrf.mxu0
      %v1754 = vadd.f32 %v1665, %v1753
      %v1755 = vpop.f32.mrf.mxu0
      %v1756 = vadd.f32 %v1667, %v1755
      %1757 = vmatmul.bf16.gmra.mxu0 %v1539
      %v1758 = vpop.f32.mrf.mxu0
      %v1759 = vadd.f32 %v1670, %v1758
      %v1760 = vpop.f32.mrf.mxu0
      %v1761 = vadd.f32 %v1672, %v1760
      %1762 = vmatmul.bf16.gmra.mxu0 %v1541
      %v1763 = vpop.f32.mrf.mxu0
      %v1764 = vadd.f32 %v1675, %v1763
      %v1765 = vpop.f32.mrf.mxu0
      %v1766 = vadd.f32 %v1677, %v1765
      %1767 = vmatmul.bf16.gmra.mxu0 %v1543
      %v1768 = vpop.f32.mrf.mxu0
      %v1769 = vadd.f32 %v1680, %v1768
      %v1770 = vpop.f32.mrf.mxu0
      %v1771 = vadd.f32 %v1682, %v1770
      %1772 = vmatmul.bf16.gmra.mxu0 %v1545
      %v1773 = vpop.f32.mrf.mxu0
      %v1774 = vadd.f32 %v1685, %v1773
      %v1775 = vpop.f32.mrf.mxu0
      %v1776 = vadd.f32 %v1687, %v1775
      %1777 = vmatmul.bf16.gmra.mxu0 %v1547
      %v1778 = vpop.f32.mrf.mxu0
      %v1779 = vadd.f32 %v1690, %v1778
      %v1780 = vpop.f32.mrf.mxu0
      %v1781 = vadd.f32 %v1692, %v1780
      %1782 = vmatmul.bf16.gmra.mxu0 %v1534
      %v1783 = vpop.f32.mrf.mxu0
      %v1784 = vadd.f32 %v1695, %v1783
      %v1785 = vpop.f32.mrf.mxu0
      %v1786 = vadd.f32 %v1697, %v1785
      %1787 = vmatmul.bf16.gmra.mxu0 %v1536
      %v1788 = vpop.f32.mrf.mxu0
      %v1789 = vadd.f32 %v1700, %v1788
      %v1790 = vpop.f32.mrf.mxu0
      %v1791 = vadd.f32 %v1702, %v1790
      %1792 = vmatmul.bf16.gmra.mxu0 %v1538
      %v1793 = vpop.f32.mrf.mxu0
      %v1794 = vadd.f32 %v1705, %v1793
      %v1795 = vpop.f32.mrf.mxu0
      %v1796 = vadd.f32 %v1707, %v1795
      %1797 = vmatmul.bf16.gmra.mxu0 %v1540
      %v1798 = vpop.f32.mrf.mxu0
      %v1799 = vadd.f32 %v1710, %v1798
      %v1800 = vpop.f32.mrf.mxu0
      %v1801 = vadd.f32 %v1712, %v1800
      %1802 = vmatmul.bf16.gmra.mxu0 %v1542
      %v1803 = vpop.f32.mrf.mxu0
      %v1804 = vadd.f32 %v1715, %v1803
      %v1805 = vpop.f32.mrf.mxu0
      %v1806 = vadd.f32 %v1717, %v1805
      %1807 = vmatmul.bf16.gmra.mxu0 %v1544
      %v1808 = vpop.f32.mrf.mxu0
      %v1809 = vadd.f32 %v1720, %v1808
      %v1810 = vpop.f32.mrf.mxu0
      %v1811 = vadd.f32 %v1722, %v1810
      %1812 = vmatmul.bf16.gmra.mxu0 %v1546
      %v1813 = vpop.f32.mrf.mxu0
      %v1814 = vadd.f32 %v1725, %v1813
      %v1815 = vpop.f32.mrf.mxu0
      %v1816 = vadd.f32 %v1727, %v1815
      %1817 = vmatmul.bf16.gmra.mxu0 %v1548
      %v1818 = vpop.f32.mrf.mxu0
      %v1819 = vadd.f32 %v1730, %v1818
      %v1820 = vpop.f32.mrf.mxu0
      %v1821 = vadd.f32 %v1732, %v1820
      %1822 = vdwg.mxu0
      %v1823 = vadd.f32 %v1433, %v1744
      %v1824 = vadd.f32 %v1434, %v1746
      %v1825 = vadd.f32 %v1435, %v1749
      %v1826 = vadd.f32 %v1436, %v1751
      %v1827 = vadd.f32 %v1437, %v1754
      %v1828 = vadd.f32 %v1438, %v1756
      %v1829 = vadd.f32 %v1439, %v1759
      %v1830 = vadd.f32 %v1440, %v1761
      %v1831 = vadd.f32 %v1441, %v1764
      %v1832 = vadd.f32 %v1442, %v1766
      %v1833 = vadd.f32 %v1443, %v1769
      %v1834 = vadd.f32 %v1444, %v1771
      %v1835 = vadd.f32 %v1445, %v1774
      %v1836 = vadd.f32 %v1446, %v1776
      %v1837 = vadd.f32 %v1447, %v1779
      %v1838 = vadd.f32 %v1448, %v1781
      %v1839 = vadd.f32 %v1449, %v1784
      %v1840 = vadd.f32 %v1450, %v1786
      %v1841 = vadd.f32 %v1451, %v1789
      %v1842 = vadd.f32 %v1452, %v1791
      %v1843 = vadd.f32 %v1453, %v1794
      %v1844 = vadd.f32 %v1454, %v1796
      %v1845 = vadd.f32 %v1455, %v1799
      %v1846 = vadd.f32 %v1456, %v1801
      %v1847 = vadd.f32 %v1457, %v1804
      %v1848 = vadd.f32 %v1458, %v1806
      %v1849 = vadd.f32 %v1459, %v1809
      %v1850 = vadd.f32 %v1460, %v1811
      %v1851 = vadd.f32 %v1461, %v1814
      %v1852 = vadd.f32 %v1462, %v1816
      %v1853 = vadd.f32 %v1463, %v1819
      %v1854 = vadd.f32 %v1464, %v1821
      %1855 = vst [vmem:[#allocation5] sm:$0xff] %v1823
      %1856 = vst [vmem:[#allocation5 + $0x8] sm:$0xff] %v1824
      %1857 = vst [vmem:[#allocation5 + $0x10] sm:$0xff] %v1825
      %1858 = vst [vmem:[#allocation5 + $0x18] sm:$0xff] %v1826
      %1859 = vst [vmem:[#allocation5 + $0x20] sm:$0xff] %v1827
      %1860 = vst [vmem:[#allocation5 + $0x28] sm:$0xff] %v1828
      %1861 = vst [vmem:[#allocation5 + $0x30] sm:$0xff] %v1829
      %1862 = vst [vmem:[#allocation5 + $0x38] sm:$0xff] %v1830
      %1863 = vst [vmem:[#allocation5 + $0x40] sm:$0xff] %v1831
      %1864 = vst [vmem:[#allocation5 + $0x48] sm:$0xff] %v1832
      %1865 = vst [vmem:[#allocation5 + $0x50] sm:$0xff] %v1833
      %1866 = vst [vmem:[#allocation5 + $0x58] sm:$0xff] %v1834
      %1867 = vst [vmem:[#allocation5 + $0x60] sm:$0xff] %v1835
      %1868 = vst [vmem:[#allocation5 + $0x68] sm:$0xff] %v1836
      %1869 = vst [vmem:[#allocation5 + $0x70] sm:$0xff] %v1837
      %1870 = vst [vmem:[#allocation5 + $0x78] sm:$0xff] %v1838
      %1871 = vst [vmem:[#allocation5 + $0x80] sm:$0xff] %v1839
      %1872 = vst [vmem:[#allocation5 + $0x88] sm:$0xff] %v1840
      %1873 = vst [vmem:[#allocation5 + $0x90] sm:$0xff] %v1841
      %1874 = vst [vmem:[#allocation5 + $0x98] sm:$0xff] %v1842
      %1875 = vst [vmem:[#allocation5 + $0xa0] sm:$0xff] %v1843
      %1876 = vst [vmem:[#allocation5 + $0xa8] sm:$0xff] %v1844
      %1877 = vst [vmem:[#allocation5 + $0xb0] sm:$0xff] %v1845
      %1878 = vst [vmem:[#allocation5 + $0xb8] sm:$0xff] %v1846
      %1879 = vst [vmem:[#allocation5 + $0xc0] sm:$0xff] %v1847
      %1880 = vst [vmem:[#allocation5 + $0xc8] sm:$0xff] %v1848
      %1881 = vst [vmem:[#allocation5 + $0xd0] sm:$0xff] %v1849
      %1882 = vst [vmem:[#allocation5 + $0xd8] sm:$0xff] %v1850
      %1883 = vst [vmem:[#allocation5 + $0xe0] sm:$0xff] %v1851
      %1884 = vst [vmem:[#allocation5 + $0xe8] sm:$0xff] %v1852
      %1885 = vst [vmem:[#allocation5 + $0xf0] sm:$0xff] %v1853
      %1886 = vst [vmem:[#allocation5 + $0xf8] sm:$0xff] %v1854
      // Predicated region
      $region68: #{dirgnn_forward.1} parent=39 // pred_check
        %p1887 = pneg %p297
      $region69: #{dirgnn_forward.1} parent=39 // pred_check_branch
        %1889 = sbr.rel (%p1887) target = $region71
      $region70: #{dirgnn_forward.1} parent=39 // pred_region
        %v1890 = vld [vmem:[#allocation2] sm:$0xff]
        %v1891 = vld [vmem:[#allocation2 + $0x8] sm:$0xff]
        %v1892 = vld [vmem:[#allocation2 + $0x10] sm:$0xff]
        %v1893 = vld [vmem:[#allocation2 + $0x18] sm:$0xff]
        %v1894 = vld [vmem:[#allocation2 + $0x20] sm:$0xff]
        %v1895 = vld [vmem:[#allocation2 + $0x28] sm:$0xff]
        %v1896 = vld [vmem:[#allocation2 + $0x30] sm:$0xff]
        %v1897 = vld [vmem:[#allocation2 + $0x38] sm:$0xff]
        %v1898 = vld [vmem:[#allocation2 + $0x40] sm:$0xff]
        %v1899 = vld [vmem:[#allocation2 + $0x48] sm:$0xff]
        %v1900 = vld [vmem:[#allocation2 + $0x50] sm:$0xff]
        %v1901 = vld [vmem:[#allocation2 + $0x58] sm:$0xff]
        %v1902 = vld [vmem:[#allocation2 + $0x60] sm:$0xff]
        %v1903 = vld [vmem:[#allocation2 + $0x68] sm:$0xff]
        %v1904 = vld [vmem:[#allocation2 + $0x70] sm:$0xff]
        %v1905 = vld [vmem:[#allocation2 + $0x78] sm:$0xff]
        %v1906 = vld [vmem:[#allocation2 + $0x80] sm:$0xff]
        %v1907 = vld [vmem:[#allocation2 + $0x88] sm:$0xff]
        %v1908 = vld [vmem:[#allocation2 + $0x90] sm:$0xff]
        %v1909 = vld [vmem:[#allocation2 + $0x98] sm:$0xff]
        %v1910 = vld [vmem:[#allocation2 + $0xa0] sm:$0xff]
        %v1911 = vld [vmem:[#allocation2 + $0xa8] sm:$0xff]
        %v1912 = vld [vmem:[#allocation2 + $0xb0] sm:$0xff]
        %v1913 = vld [vmem:[#allocation2 + $0xb8] sm:$0xff]
        %v1914 = vld [vmem:[#allocation2 + $0xc0] sm:$0xff]
        %v1915 = vld [vmem:[#allocation2 + $0xc8] sm:$0xff]
        %v1916 = vld [vmem:[#allocation2 + $0xd0] sm:$0xff]
        %v1917 = vld [vmem:[#allocation2 + $0xd8] sm:$0xff]
        %v1918 = vld [vmem:[#allocation2 + $0xe0] sm:$0xff]
        %v1919 = vld [vmem:[#allocation2 + $0xe8] sm:$0xff]
        %v1920 = vld [vmem:[#allocation2 + $0xf0] sm:$0xff]
        %v1921 = vld [vmem:[#allocation2 + $0xf8] sm:$0xff]
        %v1922 = vld [vmem:[#allocation5] sm:$0xff]
        %v1923 = vld [vmem:[#allocation5 + $0x8] sm:$0xff]
        %v1924 = vld [vmem:[#allocation5 + $0x10] sm:$0xff]
        %v1925 = vld [vmem:[#allocation5 + $0x18] sm:$0xff]
        %v1926 = vld [vmem:[#allocation5 + $0x20] sm:$0xff]
        %v1927 = vld [vmem:[#allocation5 + $0x28] sm:$0xff]
        %v1928 = vld [vmem:[#allocation5 + $0x30] sm:$0xff]
        %v1929 = vld [vmem:[#allocation5 + $0x38] sm:$0xff]
        %v1930 = vld [vmem:[#allocation5 + $0x40] sm:$0xff]
        %v1931 = vld [vmem:[#allocation5 + $0x48] sm:$0xff]
        %v1932 = vld [vmem:[#allocation5 + $0x50] sm:$0xff]
        %v1933 = vld [vmem:[#allocation5 + $0x58] sm:$0xff]
        %v1934 = vld [vmem:[#allocation5 + $0x60] sm:$0xff]
        %v1935 = vld [vmem:[#allocation5 + $0x68] sm:$0xff]
        %v1936 = vld [vmem:[#allocation5 + $0x70] sm:$0xff]
        %v1937 = vld [vmem:[#allocation5 + $0x78] sm:$0xff]
        %v1938 = vld [vmem:[#allocation5 + $0x80] sm:$0xff]
        %v1939 = vld [vmem:[#allocation5 + $0x88] sm:$0xff]
        %v1940 = vld [vmem:[#allocation5 + $0x90] sm:$0xff]
        %v1941 = vld [vmem:[#allocation5 + $0x98] sm:$0xff]
        %v1942 = vld [vmem:[#allocation5 + $0xa0] sm:$0xff]
        %v1943 = vld [vmem:[#allocation5 + $0xa8] sm:$0xff]
        %v1944 = vld [vmem:[#allocation5 + $0xb0] sm:$0xff]
        %v1945 = vld [vmem:[#allocation5 + $0xb8] sm:$0xff]
        %v1946 = vld [vmem:[#allocation5 + $0xc0] sm:$0xff]
        %v1947 = vld [vmem:[#allocation5 + $0xc8] sm:$0xff]
        %v1948 = vld [vmem:[#allocation5 + $0xd0] sm:$0xff]
        %v1949 = vld [vmem:[#allocation5 + $0xd8] sm:$0xff]
        %v1950 = vld [vmem:[#allocation5 + $0xe0] sm:$0xff]
        %v1951 = vld [vmem:[#allocation5 + $0xe8] sm:$0xff]
        %v1952 = vld [vmem:[#allocation5 + $0xf0] sm:$0xff]
        %v1953 = vld [vmem:[#allocation5 + $0xf8] sm:$0xff]
        %v1954 = vadd.f32 %v1890, %v1922
        %v1955 = vadd.f32 %v1891, %v1923
        %v1956 = vadd.f32 %v1892, %v1924
        %v1957 = vadd.f32 %v1893, %v1925
        %v1958 = vadd.f32 %v1894, %v1926
        %v1959 = vadd.f32 %v1895, %v1927
        %v1960 = vadd.f32 %v1896, %v1928
        %v1961 = vadd.f32 %v1897, %v1929
        %v1962 = vadd.f32 %v1898, %v1930
        %v1963 = vadd.f32 %v1899, %v1931
        %v1964 = vadd.f32 %v1900, %v1932
        %v1965 = vadd.f32 %v1901, %v1933
        %v1966 = vadd.f32 %v1902, %v1934
        %v1967 = vadd.f32 %v1903, %v1935
        %v1968 = vadd.f32 %v1904, %v1936
        %v1969 = vadd.f32 %v1905, %v1937
        %v1970 = vadd.f32 %v1906, %v1938
        %v1971 = vadd.f32 %v1907, %v1939
        %v1972 = vadd.f32 %v1908, %v1940
        %v1973 = vadd.f32 %v1909, %v1941
        %v1974 = vadd.f32 %v1910, %v1942
        %v1975 = vadd.f32 %v1911, %v1943
        %v1976 = vadd.f32 %v1912, %v1944
        %v1977 = vadd.f32 %v1913, %v1945
        %v1978 = vadd.f32 %v1914, %v1946
        %v1979 = vadd.f32 %v1915, %v1947
        %v1980 = vadd.f32 %v1916, %v1948
        %v1981 = vadd.f32 %v1917, %v1949
        %v1982 = vadd.f32 %v1918, %v1950
        %v1983 = vadd.f32 %v1919, %v1951
        %v1984 = vadd.f32 %v1920, %v1952
        %v1985 = vadd.f32 %v1921, %v1953
        %v1986 = vld [vmem:[%s287] sm:$0x1]
        %v1988 = vperm.slane %v1986, 0
        %v1990 = vadd.f32 %v1954, %v1988
        %v1991 = vadd.f32 %v1955, %v1988
        %v1992 = vadd.f32 %v1956, %v1988
        %v1993 = vadd.f32 %v1957, %v1988
        %v1994 = vadd.f32 %v1958, %v1988
        %v1995 = vadd.f32 %v1959, %v1988
        %v1996 = vadd.f32 %v1960, %v1988
        %v1997 = vadd.f32 %v1961, %v1988
        %v1998 = vadd.f32 %v1962, %v1988
        %v1999 = vadd.f32 %v1963, %v1988
        %v2000 = vadd.f32 %v1964, %v1988
        %v2001 = vadd.f32 %v1965, %v1988
        %v2002 = vadd.f32 %v1966, %v1988
        %v2003 = vadd.f32 %v1967, %v1988
        %v2004 = vadd.f32 %v1968, %v1988
        %v2005 = vadd.f32 %v1969, %v1988
        %v2006 = vadd.f32 %v1970, %v1988
        %v2007 = vadd.f32 %v1971, %v1988
        %v2008 = vadd.f32 %v1972, %v1988
        %v2009 = vadd.f32 %v1973, %v1988
        %v2010 = vadd.f32 %v1974, %v1988
        %v2011 = vadd.f32 %v1975, %v1988
        %v2012 = vadd.f32 %v1976, %v1988
        %v2013 = vadd.f32 %v1977, %v1988
        %v2014 = vadd.f32 %v1978, %v1988
        %v2015 = vadd.f32 %v1979, %v1988
        %v2016 = vadd.f32 %v1980, %v1988
        %v2017 = vadd.f32 %v1981, %v1988
        %v2018 = vadd.f32 %v1982, %v1988
        %v2019 = vadd.f32 %v1983, %v1988
        %v2020 = vadd.f32 %v1984, %v1988
        %v2021 = vadd.f32 %v1985, %v1988
        %v2022 = vld [vmem:[%s295] sm:$0x1]
        %v2024 = vperm.slane %v2022, 0
        %v2026 = vadd.f32 %v1990, %v2024
        %v2027 = vadd.f32 %v1991, %v2024
        %v2028 = vadd.f32 %v1992, %v2024
        %v2029 = vadd.f32 %v1993, %v2024
        %v2030 = vadd.f32 %v1994, %v2024
        %v2031 = vadd.f32 %v1995, %v2024
        %v2032 = vadd.f32 %v1996, %v2024
        %v2033 = vadd.f32 %v1997, %v2024
        %v2034 = vadd.f32 %v1998, %v2024
        %v2035 = vadd.f32 %v1999, %v2024
        %v2036 = vadd.f32 %v2000, %v2024
        %v2037 = vadd.f32 %v2001, %v2024
        %v2038 = vadd.f32 %v2002, %v2024
        %v2039 = vadd.f32 %v2003, %v2024
        %v2040 = vadd.f32 %v2004, %v2024
        %v2041 = vadd.f32 %v2005, %v2024
        %v2042 = vadd.f32 %v2006, %v2024
        %v2043 = vadd.f32 %v2007, %v2024
        %v2044 = vadd.f32 %v2008, %v2024
        %v2045 = vadd.f32 %v2009, %v2024
        %v2046 = vadd.f32 %v2010, %v2024
        %v2047 = vadd.f32 %v2011, %v2024
        %v2048 = vadd.f32 %v2012, %v2024
        %v2049 = vadd.f32 %v2013, %v2024
        %v2050 = vadd.f32 %v2014, %v2024
        %v2051 = vadd.f32 %v2015, %v2024
        %v2052 = vadd.f32 %v2016, %v2024
        %v2053 = vadd.f32 %v2017, %v2024
        %v2054 = vadd.f32 %v2018, %v2024
        %v2055 = vadd.f32 %v2019, %v2024
        %v2056 = vadd.f32 %v2020, %v2024
        %v2057 = vadd.f32 %v2021, %v2024
        %p2058 = scmp.eq.s32.totalorder %s21, 1
        // Predicated region
        $region72: #{dirgnn_forward.1} parent=70 // pred_check
          %p2059 = pneg %p2058
        $region73: #{dirgnn_forward.1} parent=70 // pred_check_branch
          %2061 = sbr.rel (%p2059) target = $region75
        $region74: #{dirgnn_forward.1} parent=70 // pred_region
          %2062 = vst [vmem:[%s6] sm:$0xff] %v2026
          %2063 = vst [vmem:[%s6 + $0x8] sm:$0xff] %v2027
          %2064 = vst [vmem:[%s6 + $0x10] sm:$0xff] %v2028
          %2065 = vst [vmem:[%s6 + $0x18] sm:$0xff] %v2029
          %2066 = vst [vmem:[%s6 + $0x20] sm:$0xff] %v2030
          %2067 = vst [vmem:[%s6 + $0x28] sm:$0xff] %v2031
          %2068 = vst [vmem:[%s6 + $0x30] sm:$0xff] %v2032
          %2069 = vst [vmem:[%s6 + $0x38] sm:$0xff] %v2033
          %2070 = vst [vmem:[%s6 + $0x40] sm:$0xff] %v2034
          %2071 = vst [vmem:[%s6 + $0x48] sm:$0xff] %v2035
          %2072 = vst [vmem:[%s6 + $0x50] sm:$0xff] %v2036
          %2073 = vst [vmem:[%s6 + $0x58] sm:$0xff] %v2037
          %2074 = vst [vmem:[%s6 + $0x60] sm:$0xff] %v2038
          %2075 = vst [vmem:[%s6 + $0x68] sm:$0xff] %v2039
          %2076 = vst [vmem:[%s6 + $0x70] sm:$0xff] %v2040
          %2077 = vst [vmem:[%s6 + $0x78] sm:$0xff] %v2041
          %2078 = vst [vmem:[%s6 + $0x80] sm:$0xff] %v2042
          %2079 = vst [vmem:[%s6 + $0x88] sm:$0xff] %v2043
          %2080 = vst [vmem:[%s6 + $0x90] sm:$0xff] %v2044
          %2081 = vst [vmem:[%s6 + $0x98] sm:$0xff] %v2045
          %2082 = vst [vmem:[%s6 + $0xa0] sm:$0xff] %v2046
          %2083 = vst [vmem:[%s6 + $0xa8] sm:$0xff] %v2047
          %2084 = vst [vmem:[%s6 + $0xb0] sm:$0xff] %v2048
          %2085 = vst [vmem:[%s6 + $0xb8] sm:$0xff] %v2049
          %2086 = vst [vmem:[%s6 + $0xc0] sm:$0xff] %v2050
          %2087 = vst [vmem:[%s6 + $0xc8] sm:$0xff] %v2051
          %2088 = vst [vmem:[%s6 + $0xd0] sm:$0xff] %v2052
          %2089 = vst [vmem:[%s6 + $0xd8] sm:$0xff] %v2053
          %2090 = vst [vmem:[%s6 + $0xe0] sm:$0xff] %v2054
          %2091 = vst [vmem:[%s6 + $0xe8] sm:$0xff] %v2055
          %2092 = vst [vmem:[%s6 + $0xf0] sm:$0xff] %v2056
          %2093 = vst [vmem:[%s6 + $0xf8] sm:$0xff] %v2057
        $region75: #{dirgnn_forward.1} parent=70 // pred_fallthru
          _
        %p2094 = scmp.lt.s32.totalorder %s21, 1
        // Predicated region
        $region76: #{dirgnn_forward.1} parent=70 // pred_check
          %p2095 = pneg %p2094
        $region77: #{dirgnn_forward.1} parent=70 // pred_check_branch
          %2097 = sbr.rel (%p2095) target = $region79
        $region78: #{dirgnn_forward.1} parent=70 // pred_region
          %v2098 = vmax.f32 %v2026, 0.0
          %v2099 = vmax.f32 %v2027, 0.0
          %v2100 = vmax.f32 %v2028, 0.0
          %v2101 = vmax.f32 %v2029, 0.0
          %v2102 = vmax.f32 %v2030, 0.0
          %v2103 = vmax.f32 %v2031, 0.0
          %v2104 = vmax.f32 %v2032, 0.0
          %v2105 = vmax.f32 %v2033, 0.0
          %v2106 = vmax.f32 %v2034, 0.0
          %v2107 = vmax.f32 %v2035, 0.0
          %v2108 = vmax.f32 %v2036, 0.0
          %v2109 = vmax.f32 %v2037, 0.0
          %v2110 = vmax.f32 %v2038, 0.0
          %v2111 = vmax.f32 %v2039, 0.0
          %v2112 = vmax.f32 %v2040, 0.0
          %v2113 = vmax.f32 %v2041, 0.0
          %v2114 = vmax.f32 %v2042, 0.0
          %v2115 = vmax.f32 %v2043, 0.0
          %v2116 = vmax.f32 %v2044, 0.0
          %v2117 = vmax.f32 %v2045, 0.0
          %v2118 = vmax.f32 %v2046, 0.0
          %v2119 = vmax.f32 %v2047, 0.0
          %v2120 = vmax.f32 %v2048, 0.0
          %v2121 = vmax.f32 %v2049, 0.0
          %v2122 = vmax.f32 %v2050, 0.0
          %v2123 = vmax.f32 %v2051, 0.0
          %v2124 = vmax.f32 %v2052, 0.0
          %v2125 = vmax.f32 %v2053, 0.0
          %v2126 = vmax.f32 %v2054, 0.0
          %v2127 = vmax.f32 %v2055, 0.0
          %v2128 = vmax.f32 %v2056, 0.0
          %v2129 = vmax.f32 %v2057, 0.0
          %v2130 = vmul.f32 %v2098, %v2098
          %v2131 = vmul.f32 %v2099, %v2099
          %v2132 = vmul.f32 %v2100, %v2100
          %v2133 = vmul.f32 %v2101, %v2101
          %v2134 = vmul.f32 %v2102, %v2102
          %v2135 = vmul.f32 %v2103, %v2103
          %v2136 = vmul.f32 %v2104, %v2104
          %v2137 = vmul.f32 %v2105, %v2105
          %v2138 = vmul.f32 %v2106, %v2106
          %v2139 = vmul.f32 %v2107, %v2107
          %v2140 = vmul.f32 %v2108, %v2108
          %v2141 = vmul.f32 %v2109, %v2109
          %v2142 = vmul.f32 %v2110, %v2110
          %v2143 = vmul.f32 %v2111, %v2111
          %v2144 = vmul.f32 %v2112, %v2112
          %v2145 = vmul.f32 %v2113, %v2113
          %v2146 = vmul.f32 %v2114, %v2114
          %v2147 = vmul.f32 %v2115, %v2115
          %v2148 = vmul.f32 %v2116, %v2116
          %v2149 = vmul.f32 %v2117, %v2117
          %v2150 = vmul.f32 %v2118, %v2118
          %v2151 = vmul.f32 %v2119, %v2119
          %v2152 = vmul.f32 %v2120, %v2120
          %v2153 = vmul.f32 %v2121, %v2121
          %v2154 = vmul.f32 %v2122, %v2122
          %v2155 = vmul.f32 %v2123, %v2123
          %v2156 = vmul.f32 %v2124, %v2124
          %v2157 = vmul.f32 %v2125, %v2125
          %v2158 = vmul.f32 %v2126, %v2126
          %v2159 = vmul.f32 %v2127, %v2127
          %v2160 = vmul.f32 %v2128, %v2128
          %v2161 = vmul.f32 %v2129, %v2129
          %2162 = vadd.xlane.f32.xlu0 %v2130
          %v2163 = vpop.xlane.xlu0 %2162
          %2164 = vadd.xlane.f32.xlu0 %v2131
          %v2165 = vpop.xlane.xlu0 %2164
          %2166 = vadd.xlane.f32.xlu0 %v2132
          %v2167 = vpop.xlane.xlu0 %2166
          %2168 = vadd.xlane.f32.xlu0 %v2133
          %v2169 = vpop.xlane.xlu0 %2168
          %2170 = vadd.xlane.f32.xlu0 %v2134
          %v2171 = vpop.xlane.xlu0 %2170
          %2172 = vadd.xlane.f32.xlu0 %v2135
          %v2173 = vpop.xlane.xlu0 %2172
          %2174 = vadd.xlane.f32.xlu0 %v2136
          %v2175 = vpop.xlane.xlu0 %2174
          %2176 = vadd.xlane.f32.xlu0 %v2137
          %v2177 = vpop.xlane.xlu0 %2176
          %2178 = vadd.xlane.f32.xlu0 %v2138
          %v2179 = vpop.xlane.xlu0 %2178
          %2180 = vadd.xlane.f32.xlu0 %v2139
          %v2181 = vpop.xlane.xlu0 %2180
          %2182 = vadd.xlane.f32.xlu0 %v2140
          %v2183 = vpop.xlane.xlu0 %2182
          %2184 = vadd.xlane.f32.xlu0 %v2141
          %v2185 = vpop.xlane.xlu0 %2184
          %2186 = vadd.xlane.f32.xlu0 %v2142
          %v2187 = vpop.xlane.xlu0 %2186
          %2188 = vadd.xlane.f32.xlu0 %v2143
          %v2189 = vpop.xlane.xlu0 %2188
          %2190 = vadd.xlane.f32.xlu0 %v2144
          %v2191 = vpop.xlane.xlu0 %2190
          %2192 = vadd.xlane.f32.xlu0 %v2145
          %v2193 = vpop.xlane.xlu0 %2192
          %2194 = vadd.xlane.f32.xlu0 %v2146
          %v2195 = vpop.xlane.xlu0 %2194
          %2196 = vadd.xlane.f32.xlu0 %v2147
          %v2197 = vpop.xlane.xlu0 %2196
          %2198 = vadd.xlane.f32.xlu0 %v2148
          %v2199 = vpop.xlane.xlu0 %2198
          %2200 = vadd.xlane.f32.xlu0 %v2149
          %v2201 = vpop.xlane.xlu0 %2200
          %2202 = vadd.xlane.f32.xlu0 %v2150
          %v2203 = vpop.xlane.xlu0 %2202
          %2204 = vadd.xlane.f32.xlu0 %v2151
          %v2205 = vpop.xlane.xlu0 %2204
          %2206 = vadd.xlane.f32.xlu0 %v2152
          %v2207 = vpop.xlane.xlu0 %2206
          %2208 = vadd.xlane.f32.xlu0 %v2153
          %v2209 = vpop.xlane.xlu0 %2208
          %2210 = vadd.xlane.f32.xlu0 %v2154
          %v2211 = vpop.xlane.xlu0 %2210
          %2212 = vadd.xlane.f32.xlu0 %v2155
          %v2213 = vpop.xlane.xlu0 %2212
          %2214 = vadd.xlane.f32.xlu0 %v2156
          %v2215 = vpop.xlane.xlu0 %2214
          %2216 = vadd.xlane.f32.xlu0 %v2157
          %v2217 = vpop.xlane.xlu0 %2216
          %2218 = vadd.xlane.f32.xlu0 %v2158
          %v2219 = vpop.xlane.xlu0 %2218
          %2220 = vadd.xlane.f32.xlu0 %v2159
          %v2221 = vpop.xlane.xlu0 %2220
          %2222 = vadd.xlane.f32.xlu0 %v2160
          %v2223 = vpop.xlane.xlu0 %2222
          %2224 = vadd.xlane.f32.xlu0 %v2161
          %v2225 = vpop.xlane.xlu0 %2224
          %v2226 = vmax.f32 %v2163, 1e-24
          %v2227 = vmax.f32 %v2165, 1e-24
          %v2228 = vmax.f32 %v2167, 1e-24
          %v2229 = vmax.f32 %v2169, 1e-24
          %v2230 = vmax.f32 %v2171, 1e-24
          %v2231 = vmax.f32 %v2173, 1e-24
          %v2232 = vmax.f32 %v2175, 1e-24
          %v2233 = vmax.f32 %v2177, 1e-24
          %v2234 = vmax.f32 %v2179, 1e-24
          %v2235 = vmax.f32 %v2181, 1e-24
          %v2236 = vmax.f32 %v2183, 1e-24
          %v2237 = vmax.f32 %v2185, 1e-24
          %v2238 = vmax.f32 %v2187, 1e-24
          %v2239 = vmax.f32 %v2189, 1e-24
          %v2240 = vmax.f32 %v2191, 1e-24
          %v2241 = vmax.f32 %v2193, 1e-24
          %v2242 = vmax.f32 %v2195, 1e-24
          %v2243 = vmax.f32 %v2197, 1e-24
          %v2244 = vmax.f32 %v2199, 1e-24
          %v2245 = vmax.f32 %v2201, 1e-24
          %v2246 = vmax.f32 %v2203, 1e-24
          %v2247 = vmax.f32 %v2205, 1e-24
          %v2248 = vmax.f32 %v2207, 1e-24
          %v2249 = vmax.f32 %v2209, 1e-24
          %v2250 = vmax.f32 %v2211, 1e-24
          %v2251 = vmax.f32 %v2213, 1e-24
          %v2252 = vmax.f32 %v2215, 1e-24
          %v2253 = vmax.f32 %v2217, 1e-24
          %v2254 = vmax.f32 %v2219, 1e-24
          %v2255 = vmax.f32 %v2221, 1e-24
          %v2256 = vmax.f32 %v2223, 1e-24
          %v2257 = vmax.f32 %v2225, 1e-24
          %v2258 = vrsqrt.pop %v2226
          %v2259 = vmul.f32 %v2258, %v2226
          %v2260 = vmul.f32 %v2259, %v2258
          %v2261 = vmul.f32 0.5, %v2260
          %v2262 = vsub.f32 1.5, %v2261
          %v2263 = vmul.f32 %v2258, %v2262
          %vm2264 = vweird.f32 %v2226
          %vm2265 = vweird.f32 %v2258
          %vm2266 = vmor %vm2264, %vm2265
          %v2267 = vsel %vm2266, %v2258, %v2263
          %v2268 = vrsqrt.pop %v2227
          %v2269 = vmul.f32 %v2268, %v2227
          %v2270 = vmul.f32 %v2269, %v2268
          %v2271 = vmul.f32 0.5, %v2270
          %v2272 = vsub.f32 1.5, %v2271
          %v2273 = vmul.f32 %v2268, %v2272
          %vm2274 = vweird.f32 %v2227
          %vm2275 = vweird.f32 %v2268
          %vm2276 = vmor %vm2274, %vm2275
          %v2277 = vsel %vm2276, %v2268, %v2273
          %v2278 = vrsqrt.pop %v2228
          %v2279 = vmul.f32 %v2278, %v2228
          %v2280 = vmul.f32 %v2279, %v2278
          %v2281 = vmul.f32 0.5, %v2280
          %v2282 = vsub.f32 1.5, %v2281
          %v2283 = vmul.f32 %v2278, %v2282
          %vm2284 = vweird.f32 %v2228
          %vm2285 = vweird.f32 %v2278
          %vm2286 = vmor %vm2284, %vm2285
          %v2287 = vsel %vm2286, %v2278, %v2283
          %v2288 = vrsqrt.pop %v2229
          %v2289 = vmul.f32 %v2288, %v2229
          %v2290 = vmul.f32 %v2289, %v2288
          %v2291 = vmul.f32 0.5, %v2290
          %v2292 = vsub.f32 1.5, %v2291
          %v2293 = vmul.f32 %v2288, %v2292
          %vm2294 = vweird.f32 %v2229
          %vm2295 = vweird.f32 %v2288
          %vm2296 = vmor %vm2294, %vm2295
          %v2297 = vsel %vm2296, %v2288, %v2293
          %v2298 = vrsqrt.pop %v2230
          %v2299 = vmul.f32 %v2298, %v2230
          %v2300 = vmul.f32 %v2299, %v2298
          %v2301 = vmul.f32 0.5, %v2300
          %v2302 = vsub.f32 1.5, %v2301
          %v2303 = vmul.f32 %v2298, %v2302
          %vm2304 = vweird.f32 %v2230
          %vm2305 = vweird.f32 %v2298
          %vm2306 = vmor %vm2304, %vm2305
          %v2307 = vsel %vm2306, %v2298, %v2303
          %v2308 = vrsqrt.pop %v2231
          %v2309 = vmul.f32 %v2308, %v2231
          %v2310 = vmul.f32 %v2309, %v2308
          %v2311 = vmul.f32 0.5, %v2310
          %v2312 = vsub.f32 1.5, %v2311
          %v2313 = vmul.f32 %v2308, %v2312
          %vm2314 = vweird.f32 %v2231
          %vm2315 = vweird.f32 %v2308
          %vm2316 = vmor %vm2314, %vm2315
          %v2317 = vsel %vm2316, %v2308, %v2313
          %v2318 = vrsqrt.pop %v2232
          %v2319 = vmul.f32 %v2318, %v2232
          %v2320 = vmul.f32 %v2319, %v2318
          %v2321 = vmul.f32 0.5, %v2320
          %v2322 = vsub.f32 1.5, %v2321
          %v2323 = vmul.f32 %v2318, %v2322
          %vm2324 = vweird.f32 %v2232
          %vm2325 = vweird.f32 %v2318
          %vm2326 = vmor %vm2324, %vm2325
          %v2327 = vsel %vm2326, %v2318, %v2323
          %v2328 = vrsqrt.pop %v2233
          %v2329 = vmul.f32 %v2328, %v2233
          %v2330 = vmul.f32 %v2329, %v2328
          %v2331 = vmul.f32 0.5, %v2330
          %v2332 = vsub.f32 1.5, %v2331
          %v2333 = vmul.f32 %v2328, %v2332
          %vm2334 = vweird.f32 %v2233
          %vm2335 = vweird.f32 %v2328
          %vm2336 = vmor %vm2334, %vm2335
          %v2337 = vsel %vm2336, %v2328, %v2333
          %v2338 = vrsqrt.pop %v2234
          %v2339 = vmul.f32 %v2338, %v2234
          %v2340 = vmul.f32 %v2339, %v2338
          %v2341 = vmul.f32 0.5, %v2340
          %v2342 = vsub.f32 1.5, %v2341
          %v2343 = vmul.f32 %v2338, %v2342
          %vm2344 = vweird.f32 %v2234
          %vm2345 = vweird.f32 %v2338
          %vm2346 = vmor %vm2344, %vm2345
          %v2347 = vsel %vm2346, %v2338, %v2343
          %v2348 = vrsqrt.pop %v2235
          %v2349 = vmul.f32 %v2348, %v2235
          %v2350 = vmul.f32 %v2349, %v2348
          %v2351 = vmul.f32 0.5, %v2350
          %v2352 = vsub.f32 1.5, %v2351
          %v2353 = vmul.f32 %v2348, %v2352
          %vm2354 = vweird.f32 %v2235
          %vm2355 = vweird.f32 %v2348
          %vm2356 = vmor %vm2354, %vm2355
          %v2357 = vsel %vm2356, %v2348, %v2353
          %v2358 = vrsqrt.pop %v2236
          %v2359 = vmul.f32 %v2358, %v2236
          %v2360 = vmul.f32 %v2359, %v2358
          %v2361 = vmul.f32 0.5, %v2360
          %v2362 = vsub.f32 1.5, %v2361
          %v2363 = vmul.f32 %v2358, %v2362
          %vm2364 = vweird.f32 %v2236
          %vm2365 = vweird.f32 %v2358
          %vm2366 = vmor %vm2364, %vm2365
          %v2367 = vsel %vm2366, %v2358, %v2363
          %v2368 = vrsqrt.pop %v2237
          %v2369 = vmul.f32 %v2368, %v2237
          %v2370 = vmul.f32 %v2369, %v2368
          %v2371 = vmul.f32 0.5, %v2370
          %v2372 = vsub.f32 1.5, %v2371
          %v2373 = vmul.f32 %v2368, %v2372
          %vm2374 = vweird.f32 %v2237
          %vm2375 = vweird.f32 %v2368
          %vm2376 = vmor %vm2374, %vm2375
          %v2377 = vsel %vm2376, %v2368, %v2373
          %v2378 = vrsqrt.pop %v2238
          %v2379 = vmul.f32 %v2378, %v2238
          %v2380 = vmul.f32 %v2379, %v2378
          %v2381 = vmul.f32 0.5, %v2380
          %v2382 = vsub.f32 1.5, %v2381
          %v2383 = vmul.f32 %v2378, %v2382
          %vm2384 = vweird.f32 %v2238
          %vm2385 = vweird.f32 %v2378
          %vm2386 = vmor %vm2384, %vm2385
          %v2387 = vsel %vm2386, %v2378, %v2383
          %v2388 = vrsqrt.pop %v2239
          %v2389 = vmul.f32 %v2388, %v2239
          %v2390 = vmul.f32 %v2389, %v2388
          %v2391 = vmul.f32 0.5, %v2390
          %v2392 = vsub.f32 1.5, %v2391
          %v2393 = vmul.f32 %v2388, %v2392
          %vm2394 = vweird.f32 %v2239
          %vm2395 = vweird.f32 %v2388
          %vm2396 = vmor %vm2394, %vm2395
          %v2397 = vsel %vm2396, %v2388, %v2393
          %v2398 = vrsqrt.pop %v2240
          %v2399 = vmul.f32 %v2398, %v2240
          %v2400 = vmul.f32 %v2399, %v2398
          %v2401 = vmul.f32 0.5, %v2400
          %v2402 = vsub.f32 1.5, %v2401
          %v2403 = vmul.f32 %v2398, %v2402
          %vm2404 = vweird.f32 %v2240
          %vm2405 = vweird.f32 %v2398
          %vm2406 = vmor %vm2404, %vm2405
          %v2407 = vsel %vm2406, %v2398, %v2403
          %v2408 = vrsqrt.pop %v2241
          %v2409 = vmul.f32 %v2408, %v2241
          %v2410 = vmul.f32 %v2409, %v2408
          %v2411 = vmul.f32 0.5, %v2410
          %v2412 = vsub.f32 1.5, %v2411
          %v2413 = vmul.f32 %v2408, %v2412
          %vm2414 = vweird.f32 %v2241
          %vm2415 = vweird.f32 %v2408
          %vm2416 = vmor %vm2414, %vm2415
          %v2417 = vsel %vm2416, %v2408, %v2413
          %v2418 = vrsqrt.pop %v2242
          %v2419 = vmul.f32 %v2418, %v2242
          %v2420 = vmul.f32 %v2419, %v2418
          %v2421 = vmul.f32 0.5, %v2420
          %v2422 = vsub.f32 1.5, %v2421
          %v2423 = vmul.f32 %v2418, %v2422
          %vm2424 = vweird.f32 %v2242
          %vm2425 = vweird.f32 %v2418
          %vm2426 = vmor %vm2424, %vm2425
          %v2427 = vsel %vm2426, %v2418, %v2423
          %v2428 = vrsqrt.pop %v2243
          %v2429 = vmul.f32 %v2428, %v2243
          %v2430 = vmul.f32 %v2429, %v2428
          %v2431 = vmul.f32 0.5, %v2430
          %v2432 = vsub.f32 1.5, %v2431
          %v2433 = vmul.f32 %v2428, %v2432
          %vm2434 = vweird.f32 %v2243
          %vm2435 = vweird.f32 %v2428
          %vm2436 = vmor %vm2434, %vm2435
          %v2437 = vsel %vm2436, %v2428, %v2433
          %v2438 = vrsqrt.pop %v2244
          %v2439 = vmul.f32 %v2438, %v2244
          %v2440 = vmul.f32 %v2439, %v2438
          %v2441 = vmul.f32 0.5, %v2440
          %v2442 = vsub.f32 1.5, %v2441
          %v2443 = vmul.f32 %v2438, %v2442
          %vm2444 = vweird.f32 %v2244
          %vm2445 = vweird.f32 %v2438
          %vm2446 = vmor %vm2444, %vm2445
          %v2447 = vsel %vm2446, %v2438, %v2443
          %v2448 = vrsqrt.pop %v2245
          %v2449 = vmul.f32 %v2448, %v2245
          %v2450 = vmul.f32 %v2449, %v2448
          %v2451 = vmul.f32 0.5, %v2450
          %v2452 = vsub.f32 1.5, %v2451
          %v2453 = vmul.f32 %v2448, %v2452
          %vm2454 = vweird.f32 %v2245
          %vm2455 = vweird.f32 %v2448
          %vm2456 = vmor %vm2454, %vm2455
          %v2457 = vsel %vm2456, %v2448, %v2453
          %v2458 = vrsqrt.pop %v2246
          %v2459 = vmul.f32 %v2458, %v2246
          %v2460 = vmul.f32 %v2459, %v2458
          %v2461 = vmul.f32 0.5, %v2460
          %v2462 = vsub.f32 1.5, %v2461
          %v2463 = vmul.f32 %v2458, %v2462
          %vm2464 = vweird.f32 %v2246
          %vm2465 = vweird.f32 %v2458
          %vm2466 = vmor %vm2464, %vm2465
          %v2467 = vsel %vm2466, %v2458, %v2463
          %v2468 = vrsqrt.pop %v2247
          %v2469 = vmul.f32 %v2468, %v2247
          %v2470 = vmul.f32 %v2469, %v2468
          %v2471 = vmul.f32 0.5, %v2470
          %v2472 = vsub.f32 1.5, %v2471
          %v2473 = vmul.f32 %v2468, %v2472
          %vm2474 = vweird.f32 %v2247
          %vm2475 = vweird.f32 %v2468
          %vm2476 = vmor %vm2474, %vm2475
          %v2477 = vsel %vm2476, %v2468, %v2473
          %v2478 = vrsqrt.pop %v2248
          %v2479 = vmul.f32 %v2478, %v2248
          %v2480 = vmul.f32 %v2479, %v2478
          %v2481 = vmul.f32 0.5, %v2480
          %v2482 = vsub.f32 1.5, %v2481
          %v2483 = vmul.f32 %v2478, %v2482
          %vm2484 = vweird.f32 %v2248
          %vm2485 = vweird.f32 %v2478
          %vm2486 = vmor %vm2484, %vm2485
          %v2487 = vsel %vm2486, %v2478, %v2483
          %v2488 = vrsqrt.pop %v2249
          %v2489 = vmul.f32 %v2488, %v2249
          %v2490 = vmul.f32 %v2489, %v2488
          %v2491 = vmul.f32 0.5, %v2490
          %v2492 = vsub.f32 1.5, %v2491
          %v2493 = vmul.f32 %v2488, %v2492
          %vm2494 = vweird.f32 %v2249
          %vm2495 = vweird.f32 %v2488
          %vm2496 = vmor %vm2494, %vm2495
          %v2497 = vsel %vm2496, %v2488, %v2493
          %v2498 = vrsqrt.pop %v2250
          %v2499 = vmul.f32 %v2498, %v2250
          %v2500 = vmul.f32 %v2499, %v2498
          %v2501 = vmul.f32 0.5, %v2500
          %v2502 = vsub.f32 1.5, %v2501
          %v2503 = vmul.f32 %v2498, %v2502
          %vm2504 = vweird.f32 %v2250
          %vm2505 = vweird.f32 %v2498
          %vm2506 = vmor %vm2504, %vm2505
          %v2507 = vsel %vm2506, %v2498, %v2503
          %v2508 = vrsqrt.pop %v2251
          %v2509 = vmul.f32 %v2508, %v2251
          %v2510 = vmul.f32 %v2509, %v2508
          %v2511 = vmul.f32 0.5, %v2510
          %v2512 = vsub.f32 1.5, %v2511
          %v2513 = vmul.f32 %v2508, %v2512
          %vm2514 = vweird.f32 %v2251
          %vm2515 = vweird.f32 %v2508
          %vm2516 = vmor %vm2514, %vm2515
          %v2517 = vsel %vm2516, %v2508, %v2513
          %v2518 = vrsqrt.pop %v2252
          %v2519 = vmul.f32 %v2518, %v2252
          %v2520 = vmul.f32 %v2519, %v2518
          %v2521 = vmul.f32 0.5, %v2520
          %v2522 = vsub.f32 1.5, %v2521
          %v2523 = vmul.f32 %v2518, %v2522
          %vm2524 = vweird.f32 %v2252
          %vm2525 = vweird.f32 %v2518
          %vm2526 = vmor %vm2524, %vm2525
          %v2527 = vsel %vm2526, %v2518, %v2523
          %v2528 = vrsqrt.pop %v2253
          %v2529 = vmul.f32 %v2528, %v2253
          %v2530 = vmul.f32 %v2529, %v2528
          %v2531 = vmul.f32 0.5, %v2530
          %v2532 = vsub.f32 1.5, %v2531
          %v2533 = vmul.f32 %v2528, %v2532
          %vm2534 = vweird.f32 %v2253
          %vm2535 = vweird.f32 %v2528
          %vm2536 = vmor %vm2534, %vm2535
          %v2537 = vsel %vm2536, %v2528, %v2533
          %v2538 = vrsqrt.pop %v2254
          %v2539 = vmul.f32 %v2538, %v2254
          %v2540 = vmul.f32 %v2539, %v2538
          %v2541 = vmul.f32 0.5, %v2540
          %v2542 = vsub.f32 1.5, %v2541
          %v2543 = vmul.f32 %v2538, %v2542
          %vm2544 = vweird.f32 %v2254
          %vm2545 = vweird.f32 %v2538
          %vm2546 = vmor %vm2544, %vm2545
          %v2547 = vsel %vm2546, %v2538, %v2543
          %v2548 = vrsqrt.pop %v2255
          %v2549 = vmul.f32 %v2548, %v2255
          %v2550 = vmul.f32 %v2549, %v2548
          %v2551 = vmul.f32 0.5, %v2550
          %v2552 = vsub.f32 1.5, %v2551
          %v2553 = vmul.f32 %v2548, %v2552
          %vm2554 = vweird.f32 %v2255
          %vm2555 = vweird.f32 %v2548
          %vm2556 = vmor %vm2554, %vm2555
          %v2557 = vsel %vm2556, %v2548, %v2553
          %v2558 = vrsqrt.pop %v2256
          %v2559 = vmul.f32 %v2558, %v2256
          %v2560 = vmul.f32 %v2559, %v2558
          %v2561 = vmul.f32 0.5, %v2560
          %v2562 = vsub.f32 1.5, %v2561
          %v2563 = vmul.f32 %v2558, %v2562
          %vm2564 = vweird.f32 %v2256
          %vm2565 = vweird.f32 %v2558
          %vm2566 = vmor %vm2564, %vm2565
          %v2567 = vsel %vm2566, %v2558, %v2563
          %v2568 = vrsqrt.pop %v2257
          %v2569 = vmul.f32 %v2568, %v2257
          %v2570 = vmul.f32 %v2569, %v2568
          %v2571 = vmul.f32 0.5, %v2570
          %v2572 = vsub.f32 1.5, %v2571
          %v2573 = vmul.f32 %v2568, %v2572
          %vm2574 = vweird.f32 %v2257
          %vm2575 = vweird.f32 %v2568
          %vm2576 = vmor %vm2574, %vm2575
          %v2577 = vsel %vm2576, %v2568, %v2573
          %v2578 = vmul.f32 %v2098, %v2267
          %v2579 = vmul.f32 %v2099, %v2277
          %v2580 = vmul.f32 %v2100, %v2287
          %v2581 = vmul.f32 %v2101, %v2297
          %v2582 = vmul.f32 %v2102, %v2307
          %v2583 = vmul.f32 %v2103, %v2317
          %v2584 = vmul.f32 %v2104, %v2327
          %v2585 = vmul.f32 %v2105, %v2337
          %v2586 = vmul.f32 %v2106, %v2347
          %v2587 = vmul.f32 %v2107, %v2357
          %v2588 = vmul.f32 %v2108, %v2367
          %v2589 = vmul.f32 %v2109, %v2377
          %v2590 = vmul.f32 %v2110, %v2387
          %v2591 = vmul.f32 %v2111, %v2397
          %v2592 = vmul.f32 %v2112, %v2407
          %v2593 = vmul.f32 %v2113, %v2417
          %v2594 = vmul.f32 %v2114, %v2427
          %v2595 = vmul.f32 %v2115, %v2437
          %v2596 = vmul.f32 %v2116, %v2447
          %v2597 = vmul.f32 %v2117, %v2457
          %v2598 = vmul.f32 %v2118, %v2467
          %v2599 = vmul.f32 %v2119, %v2477
          %v2600 = vmul.f32 %v2120, %v2487
          %v2601 = vmul.f32 %v2121, %v2497
          %v2602 = vmul.f32 %v2122, %v2507
          %v2603 = vmul.f32 %v2123, %v2517
          %v2604 = vmul.f32 %v2124, %v2527
          %v2605 = vmul.f32 %v2125, %v2537
          %v2606 = vmul.f32 %v2126, %v2547
          %v2607 = vmul.f32 %v2127, %v2557
          %v2608 = vmul.f32 %v2128, %v2567
          %v2609 = vmul.f32 %v2129, %v2577
          %2610 = vst [vmem:[#allocation2] sm:$0xff] %v2578
          %2611 = vst [vmem:[#allocation2 + $0x8] sm:$0xff] %v2579
          %2612 = vst [vmem:[#allocation2 + $0x10] sm:$0xff] %v2580
          %2613 = vst [vmem:[#allocation2 + $0x18] sm:$0xff] %v2581
          %2614 = vst [vmem:[#allocation2 + $0x20] sm:$0xff] %v2582
          %2615 = vst [vmem:[#allocation2 + $0x28] sm:$0xff] %v2583
          %2616 = vst [vmem:[#allocation2 + $0x30] sm:$0xff] %v2584
          %2617 = vst [vmem:[#allocation2 + $0x38] sm:$0xff] %v2585
          %2618 = vst [vmem:[#allocation2 + $0x40] sm:$0xff] %v2586
          %2619 = vst [vmem:[#allocation2 + $0x48] sm:$0xff] %v2587
          %2620 = vst [vmem:[#allocation2 + $0x50] sm:$0xff] %v2588
          %2621 = vst [vmem:[#allocation2 + $0x58] sm:$0xff] %v2589
          %2622 = vst [vmem:[#allocation2 + $0x60] sm:$0xff] %v2590
          %2623 = vst [vmem:[#allocation2 + $0x68] sm:$0xff] %v2591
          %2624 = vst [vmem:[#allocation2 + $0x70] sm:$0xff] %v2592
          %2625 = vst [vmem:[#allocation2 + $0x78] sm:$0xff] %v2593
          %2626 = vst [vmem:[#allocation2 + $0x80] sm:$0xff] %v2594
          %2627 = vst [vmem:[#allocation2 + $0x88] sm:$0xff] %v2595
          %2628 = vst [vmem:[#allocation2 + $0x90] sm:$0xff] %v2596
          %2629 = vst [vmem:[#allocation2 + $0x98] sm:$0xff] %v2597
          %2630 = vst [vmem:[#allocation2 + $0xa0] sm:$0xff] %v2598
          %2631 = vst [vmem:[#allocation2 + $0xa8] sm:$0xff] %v2599
          %2632 = vst [vmem:[#allocation2 + $0xb0] sm:$0xff] %v2600
          %2633 = vst [vmem:[#allocation2 + $0xb8] sm:$0xff] %v2601
          %2634 = vst [vmem:[#allocation2 + $0xc0] sm:$0xff] %v2602
          %2635 = vst [vmem:[#allocation2 + $0xc8] sm:$0xff] %v2603
          %2636 = vst [vmem:[#allocation2 + $0xd0] sm:$0xff] %v2604
          %2637 = vst [vmem:[#allocation2 + $0xd8] sm:$0xff] %v2605
          %2638 = vst [vmem:[#allocation2 + $0xe0] sm:$0xff] %v2606
          %2639 = vst [vmem:[#allocation2 + $0xe8] sm:$0xff] %v2607
          %2640 = vst [vmem:[#allocation2 + $0xf0] sm:$0xff] %v2608
          %2641 = vst [vmem:[#allocation2 + $0xf8] sm:$0xff] %v2609
        $region79: #{dirgnn_forward.1} parent=70 // pred_fallthru
          _
      $region71: #{dirgnn_forward.1} parent=39 // pred_fallthru
        _
      // Predicated region
      $region80: #{dirgnn_forward.1} parent=39 // pred_check
        %p2642 = pneg %p172
      $region81: #{dirgnn_forward.1} parent=39 // pred_check_branch
        %2644 = sbr.rel (%p2642) target = $region83
      $region82: #{dirgnn_forward.1} parent=39 // pred_region
        _
      $region83: #{dirgnn_forward.1} parent=39 // pred_fallthru
        _
      // Predicated region
      $region84: #{dirgnn_forward.1} parent=39 // pred_check
        %p2645 = pneg %p172
      $region85: #{dirgnn_forward.1} parent=39 // pred_check_branch
        %2647 = sbr.rel (%p2645) target = $region87
      $region86: #{dirgnn_forward.1} parent=39 // pred_region
        _
      $region87: #{dirgnn_forward.1} parent=39 // pred_fallthru
        _
    $region40: #{dirgnn_forward.1} parent=5 // pred_fallthru
      _
    %p2648 = scmp.le.s32.totalorder 2, %s12
    // Predicated region
    $region88: #{dirgnn_forward.1} parent=5 // pred_check
      %p2649 = pneg %p2648
    $region89: #{dirgnn_forward.1} parent=5 // pred_check_branch
      %2651 = sbr.rel (%p2649) target = $region91
    $region90: #{dirgnn_forward.1} parent=5 // pred_region
      %s2652 = ssub.s32 %s12, 2
    $region91: #{dirgnn_forward.1} parent=5 // pred_fallthru
      _
  $region6: #{dirgnn_forward.1} parent=0 // loop_footer
    %s16 = sadd.s32 1, %s12
  $region7: #{dirgnn_forward.1} parent=0 // loop_footer_branch
    %11 = sbr.rel target = $region3
  $region8: #{dirgnn_forward.1} parent=0 // loop_exit
    _
  %2653 = vsyncmov [#allocation6]
  %s2654 = vpop.sfrf %2653
  %p2655 = scmp.eq.s32.totalorder %s2654, 0
  %p2656 = pneg %p2655
  %2658 = shalt.err (%p2656)

</llo_original>
